<compile_context>
chip_gen: v7x
topology: tpu7x:2x2x1
jax: 0.10.0
libtpu: 0.0.40
codegen_flags: <defaults>
</compile_context>

<pallas_src>
import jax
import jax.numpy as jnp
from jax.experimental import pallas as pl
from jax.experimental.pallas import tpu as pltpu

HIDDEN = 256  # fixed by the module definition (conv1/conv2 out channels)


def da_ins_head_kernel(x_ref, w1_ref, w2_ref, aux_ref, b3_ref, o_ref):
    """One (batch, L-tile) grid step.

    x_ref  : (1, C_in, tile_L) caller dtype (f32 passthrough or bf16)
    w1_ref : (256, C_in)  compute dtype
    w2_ref : (256, 256)   compute dtype
    aux_ref: (256, 3) f32, columns = [b1, b2, w3]
    b3_ref : (1,) f32 scalar in SMEM
    o_ref  : (1, 1, tile_L) f32
    """
    cdt = w1_ref.dtype
    x = x_ref[0].astype(cdt)                 # per-tile cast; no HBM pre-pass

    b1 = aux_ref[:, 0:1]
    b2 = aux_ref[:, 1:2]
    w3 = aux_ref[:, 2:3]

    # Layer 1: MXU matmul, f32 accumulate; bias + ReLU in f32 on the VPU; the
    # intermediate is materialized in the compute dtype (halves VMEM traffic).
    t = jnp.dot(w1_ref[...], x, preferred_element_type=jnp.float32)
    t = jnp.maximum(t + b1, 0.0).astype(cdt)                  # (256, tile_L)

    # Layer 2: MXU matmul, f32 epilogue.
    t2 = jnp.dot(w2_ref[...], t, preferred_element_type=jnp.float32)
    t2 = jnp.maximum(t2 + b2, 0.0)                            # (256, tile_L) f32

    # Layer 3 (256 -> 1): VPU multiply + sublane (XLU) reduce; keeps the
    # single-output-column op off the MXU.
    o = jnp.sum(t2 * w3, axis=0, keepdims=True) + b3_ref[0]   # (1, tile_L)
    o_ref[...] = o[None].astype(o_ref.dtype)                  # (1, 1, tile_L)


def _choose_tile_l(L, c_in, hidden, x_itemsize, w_itemsize, requested,
                   vmem_budget_bytes):
    """Pick the lane-tile: clamp to L for small L, shrink to the VMEM budget."""
    def est(tl):
        return (2 * c_in * tl * x_itemsize          # x double buffer
                + 2 * tl * 4                        # out double buffer (f32)
                + 2 * hidden * tl * 4               # live intermediates
                + 2 * ((c_in + hidden) * hidden * w_itemsize
                       + hidden * 128 * 4))         # weights + padded aux

    tile = min(int(requested), L)
    if tile < L:
        # Multi-tile path: lane dim must be a multiple of 128.
        tile = max(128, (tile // 128) * 128)
    while tile > 256 and est(tile) > vmem_budget_bytes:
        tile = max(256, ((tile // 2) // 128) * 128)
    return tile


def da_ins_head_forward(x_ncl, params, *, tile_l=2048,
                        compute_dtype=jnp.bfloat16,
                        vmem_limit_bytes=48 * 1024 * 1024):
    """x_ncl: (N, C_in, L) f32 or bf16 (PyTorch NCL layout). Returns (N,1,L) f32.

    tile_l: max positions (lanes) per grid step; clamped to L and to the VMEM
            budget.  Use the default 2048; raise vmem_limit_bytes (up to
            ~64-96 MiB) on v5e/v6e to allow larger tiles for very large C_in.
    compute_dtype: matmul input dtype.  bfloat16 is recommended on v5e, v6e
            and v7x (MXU is bf16-native; bias/ReLU epilogue stays f32 on the
            VPU).  Use float32 for exact f32 parity with the PyTorch module.
    """
    w1, b1, w2, b2, w3, b3 = params
    N, C_in, L = x_ncl.shape
    hidden = w1.shape[0]

    w1c = w1.astype(compute_dtype)
    w2c = w2.astype(compute_dtype)
    aux = jnp.concatenate([b1, b2, w3], axis=1).astype(jnp.float32)  # (h, 3)
    b3s = b3.reshape((1,)).astype(jnp.float32)

    w_item = jnp.dtype(compute_dtype).itemsize
    tile = _choose_tile_l(L, C_in, hidden, x_ncl.dtype.itemsize, w_item,
                          tile_l, int(0.75 * vmem_limit_bytes))
    n_tiles = pl.cdiv(L, tile)
    grid = (N, n_tiles)

    flops = 2 * N * n_tiles * tile * (hidden * C_in + hidden * hidden + hidden)
    bytes_accessed = (x_ncl.size * x_ncl.dtype.itemsize
                      + (w1c.size + w2c.size) * w_item
                      + aux.size * 4 + 4
                      + N * L * 4)
    cost = pl.CostEstimate(flops=int(flops), transcendentals=0,
                           bytes_accessed=int(bytes_accessed))

    def _call(single_buffer_weights):
        # Grid-invariant operands (constant index map) only need one buffer.
        pm = ({"pipeline_mode": pl.Buffered(1)}
              if single_buffer_weights else {})
        grid_spec = pltpu.PrefetchScalarGridSpec(
            num_scalar_prefetch=0,
            grid=grid,
            in_specs=[
                pl.BlockSpec((1, C_in, tile), lambda b, l: (b, 0, l)),      # x
                pl.BlockSpec((hidden, C_in), lambda b, l: (0, 0), **pm),    # W1
                pl.BlockSpec((hidden, hidden), lambda b, l: (0, 0), **pm),  # W2
                pl.BlockSpec((hidden, 3), lambda b, l: (0, 0), **pm),       # [b1,b2,w3]
                pl.BlockSpec(memory_space=pltpu.MemorySpace.SMEM),          # b3
            ],
            out_specs=pl.BlockSpec((1, 1, tile), lambda b, l: (b, 0, l)),
        )
        return pl.pallas_call(
            da_ins_head_kernel,
            out_shape=jax.ShapeDtypeStruct((N, 1, L), jnp.float32),
            grid_spec=grid_spec,
            compiler_params=pltpu.CompilerParams(
                dimension_semantics=("parallel", "parallel"),
                vmem_limit_bytes=vmem_limit_bytes,
            ),
            cost_estimate=cost,
        )(x_ncl, w1c, w2c, aux, b3s)

    try:
        return _call(True)
    except Exception:
        # Fallback if this JAX build rejects pipeline_mode=pl.Buffered(1)
        # on a top-level BlockSpec: use default double buffering.
        return _call(False)


def init_params(key, in_channels, hidden=HIDDEN, std=0.001):
    """Matches torch.nn.init.normal_(w, std) with zero bias.

    PyTorch Conv1d weight is (out_ch, in_ch, 1); stored squeezed as
    (out_ch, in_ch) so the kernel computes W @ x directly in NCL layout.
    conv3's weight is stored as a (hidden, 1) column for the reduction form.
    """
    k1, k2, k3 = jax.random.split(key, 3)
    w1 = jax.random.normal(k1, (hidden, in_channels), jnp.float32) * std
    w2 = jax.random.normal(k2, (hidden, hidden), jnp.float32) * std
    w3 = jax.random.normal(k3, (hidden, 1), jnp.float32) * std
    b1 = jnp.zeros((hidden, 1), jnp.float32)
    b2 = jnp.zeros((hidden, 1), jnp.float32)
    b3 = jnp.zeros((1, 1), jnp.float32)
    return (w1, b1, w2, b2, w3, b3)


def reference_forward(x_ncl, params, compute_dtype=jnp.float32):
    """Pure-JAX reference mirroring the PyTorch module (and the kernel's
    matmul-input quantization recipe when compute_dtype=bfloat16)."""
    w1, b1, w2, b2, w3, b3 = params
    xc = x_ncl.astype(compute_dtype)
    t = jnp.einsum('oc,ncl->nol', w1.astype(compute_dtype), xc,
                   preferred_element_type=jnp.float32)
    t = jnp.maximum(t + b1[None], 0.0).astype(compute_dtype)
    t = jnp.einsum('oh,nhl->nol', w2.astype(compute_dtype), t,
                   preferred_element_type=jnp.float32)
    t = jnp.maximum(t + b2[None], 0.0)
    o = jnp.einsum('ho,nhl->nol', w3, t,
                   preferred_element_type=jnp.float32) + b3[None]
    return o


if __name__ == "__main__":
    key = jax.random.PRNGKey(0)
    kx1, kx2, kx3, kp = jax.random.split(key, 4)

    N, C_in = 2, 64
    # std bumped above the module's 0.001 default so outputs are O(0.1) and
    # the numeric comparison is meaningful (forward semantics are unchanged).
    params = init_params(kp, C_in, std=0.05)

    # 1) Tiny L, exact-f32 path: tile clamps to L=16 (single full-extent tile).
    L = 16
    x = jax.random.normal(kx1, (N, C_in, L), jnp.float32)
    out = jax.block_until_ready(
        da_ins_head_forward(x, params, compute_dtype=jnp.float32))
    ref = reference_forward(x, params, jnp.float32)
    assert out.shape == (N, 1, L), out.shape
    assert jnp.allclose(out, ref, atol=5e-3, rtol=2e-2), \
        float(jnp.max(jnp.abs(out - ref)))

    # 2) Multi-tile grid with a ragged last L tile (300 = 2*128 + 44), f32.
    L = 300
    x = jax.random.normal(kx2, (N, C_in, L), jnp.float32)
    out = jax.block_until_ready(
        da_ins_head_forward(x, params, tile_l=128, compute_dtype=jnp.float32))
    ref = reference_forward(x, params, jnp.float32)
    assert out.shape == (N, 1, L), out.shape
    assert jnp.allclose(out, ref, atol=5e-3, rtol=2e-2), \
        float(jnp.max(jnp.abs(out - ref)))

    # 3) bf16 matmul path (recommended on v5e/v6e/v7x), ragged multi-tile.
    L = 600
    x = jax.random.normal(kx3, (N, C_in, L), jnp.float32)
    out = jax.block_until_ready(
        da_ins_head_forward(x, params, tile_l=256, compute_dtype=jnp.bfloat16))
    ref = reference_forward(x, params, jnp.bfloat16)
    assert out.shape == (N, 1, L), out.shape
    assert jnp.allclose(out, ref, atol=5e-3, rtol=2e-2), \
        float(jnp.max(jnp.abs(out - ref)))

    print("KERNEL_OK")
</pallas_src>

<mosaic_0001>
module attributes {stable_mosaic.version = 11 : i64} {
  func.func @da_ins_head_kernel(%arg0: i32, %arg1: i32, %arg2: memref<1x64x16xf32, #tpu.memory_space<vmem>>, %arg3: memref<256x64xf32, #tpu.memory_space<vmem>>, %arg4: memref<256x256xf32, #tpu.memory_space<vmem>>, %arg5: memref<256x3xf32, #tpu.memory_space<vmem>>, %arg6: memref<1xf32, #tpu.memory_space<smem>>, %arg7: memref<1x1x16xf32, #tpu.memory_space<vmem>>) attributes {dimension_semantics = [#tpu.dimension_semantics<parallel>, #tpu.dimension_semantics<parallel>], iteration_bounds = array<i64: 2, 1>, scalar_prefetch = 0 : i64, scratch_operands = 0 : i64, tpu.core_type = #tpu.core_type<tc>, window_params = [{transform_indices = @transform_0, window_bounds = array<i64: 1, 64, 16>}, {pipeline_mode = #tpu.pipeline_mode<synchronous>, transform_indices = @transform_1, window_bounds = array<i64: 256, 64>}, {pipeline_mode = #tpu.pipeline_mode<synchronous>, transform_indices = @transform_2, window_bounds = array<i64: 256, 256>}, {pipeline_mode = #tpu.pipeline_mode<synchronous>, transform_indices = @transform_3, window_bounds = array<i64: 256, 3>}, {transform_indices = @transform_4, window_bounds = array<i64: 1>}, {transform_indices = @transform_5, window_bounds = array<i64: 1, 1, 16>}]} {
    %c0 = arith.constant 0 : index
    %c0_0 = arith.constant 0 : index
    %c0_1 = arith.constant 0 : index
    %0 = vector.load %arg2[%c0, %c0_0, %c0_1] : memref<1x64x16xf32, #tpu.memory_space<vmem>>, vector<1x64x16xf32>
    %1 = vector.shape_cast %0 : vector<1x64x16xf32> to vector<64x16xf32>
    %c0_2 = arith.constant 0 : index
    %c0_3 = arith.constant 0 : index
    %2 = vector.load %arg5[%c0_2, %c0_3] : memref<256x3xf32, #tpu.memory_space<vmem>>, vector<256x1xf32>
    %c0_4 = arith.constant 0 : index
    %c1 = arith.constant 1 : index
    %3 = vector.load %arg5[%c0_4, %c1] : memref<256x3xf32, #tpu.memory_space<vmem>>, vector<256x1xf32>
    %c0_5 = arith.constant 0 : index
    %c2 = arith.constant 2 : index
    %4 = vector.load %arg5[%c0_5, %c2] : memref<256x3xf32, #tpu.memory_space<vmem>>, vector<256x1xf32>
    %c0_6 = arith.constant 0 : index
    %c0_7 = arith.constant 0 : index
    %5 = vector.load %arg3[%c0_6, %c0_7] : memref<256x64xf32, #tpu.memory_space<vmem>>, vector<256x64xf32>
    %cst = arith.constant dense<0.000000e+00> : vector<256x16xf32>
    %6 = tpu.matmul %5, %1, %cst {dimension_numbers = #tpu.dot_dimension_numbers<[1], [0], [0], [1], [0, 0, 1, 1], [], []>} : vector<256x64xf32>, vector<64x16xf32>, vector<256x16xf32> -> vector<256x16xf32>
    %7 = vector.broadcast %2 : vector<256x1xf32> to vector<256x16xf32>
    %8 = arith.addf %6, %7 : vector<256x16xf32>
    %cst_8 = arith.constant 0.000000e+00 : f32
    %9 = vector.broadcast %cst_8 : f32 to vector<256x16xf32>
    %10 = arith.maximumf %8, %9 : vector<256x16xf32>
    %c0_9 = arith.constant 0 : index
    %c0_10 = arith.constant 0 : index
    %11 = vector.load %arg4[%c0_9, %c0_10] : memref<256x256xf32, #tpu.memory_space<vmem>>, vector<256x256xf32>
    %cst_11 = arith.constant dense<0.000000e+00> : vector<256x16xf32>
    %12 = tpu.matmul %11, %10, %cst_11 {dimension_numbers = #tpu.dot_dimension_numbers<[1], [0], [0], [1], [0, 0, 1, 1], [], []>} : vector<256x256xf32>, vector<256x16xf32>, vector<256x16xf32> -> vector<256x16xf32>
    %13 = vector.broadcast %3 : vector<256x1xf32> to vector<256x16xf32>
    %14 = arith.addf %12, %13 : vector<256x16xf32>
    %cst_12 = arith.constant 0.000000e+00 : f32
    %15 = vector.broadcast %cst_12 : f32 to vector<256x16xf32>
    %16 = arith.maximumf %14, %15 : vector<256x16xf32>
    %17 = vector.broadcast %4 : vector<256x1xf32> to vector<256x16xf32>
    %18 = arith.mulf %16, %17 : vector<256x16xf32>
    %cst_13 = arith.constant dense<0.000000e+00> : vector<16xf32>
    %19 = vector.multi_reduction <add>, %18, %cst_13 [0] : vector<256x16xf32> to vector<16xf32>
    %20 = vector.shape_cast %19 : vector<16xf32> to vector<1x16xf32>
    %c0_14 = arith.constant 0 : index
    %21 = memref.load %arg6[%c0_14] : memref<1xf32, #tpu.memory_space<smem>>
    %22 = vector.broadcast %21 : f32 to vector<1x16xf32>
    %23 = arith.addf %20, %22 : vector<1x16xf32>
    %24 = vector.shape_cast %23 : vector<1x16xf32> to vector<1x1x16xf32>
    %c0_15 = arith.constant 0 : index
    %c0_16 = arith.constant 0 : index
    %c0_17 = arith.constant 0 : index
    %25 = vector.load %arg7[%c0_15, %c0_16, %c0_17] : memref<1x1x16xf32, #tpu.memory_space<vmem>>, vector<1x1x16xf32>
    tpu.vector_store %arg7[%c0_15, %c0_16, %c0_17], %24 {strides = array<i32>} : memref<1x1x16xf32, #tpu.memory_space<vmem>>, vector<1x1x16xf32>,
    return
  }
  func.func @transform_0(%arg0: i32, %arg1: i32) -> (i32, i32, i32) {
    %c0_i32 = arith.constant 0 : i32
    %c0_i32_0 = arith.constant 0 : i32
    return %arg0, %c0_i32, %arg1 : i32, i32, i32
  }
  func.func @transform_1(%arg0: i32, %arg1: i32) -> (i32, i32) {
    %c0_i32 = arith.constant 0 : i32
    %c0_i32_0 = arith.constant 0 : i32
    %c0_i32_1 = arith.constant 0 : i32
    return %c0_i32, %c0_i32_0 : i32, i32
  }
  func.func @transform_2(%arg0: i32, %arg1: i32) -> (i32, i32) {
    %c0_i32 = arith.constant 0 : i32
    %c0_i32_0 = arith.constant 0 : i32
    %c0_i32_1 = arith.constant 0 : i32
    return %c0_i32, %c0_i32_0 : i32, i32
  }
  func.func @transform_3(%arg0: i32, %arg1: i32) -> (i32, i32) {
    %c0_i32 = arith.constant 0 : i32
    %c0_i32_0 = arith.constant 0 : i32
    %c0_i32_1 = arith.constant 0 : i32
    return %c0_i32, %c0_i32_0 : i32, i32
  }
  func.func @transform_4(%arg0: i32, %arg1: i32) -> i32 {
    %c0_i32 = arith.constant 0 : i32
    %c0_i32_0 = arith.constant 0 : i32
    return %c0_i32 : i32
  }
  func.func @transform_5(%arg0: i32, %arg1: i32) -> (i32, i32, i32) {
    %c0_i32 = arith.constant 0 : i32
    %c0_i32_0 = arith.constant 0 : i32
    return %arg0, %c0_i32, %arg1 : i32, i32, i32
  }
}

module attributes {stable_mosaic.version = 11 : i64} {
  func.func @da_ins_head_kernel(%arg0: i32, %arg1: i32, %arg2: memref<1x64x16xf32, #tpu.memory_space<vmem>>, %arg3: memref<256x64xf32, #tpu.memory_space<vmem>>, %arg4: memref<256x256xf32, #tpu.memory_space<vmem>>, %arg5: memref<256x3xf32, #tpu.memory_space<vmem>>, %arg6: memref<1xf32, #tpu.memory_space<smem>>, %arg7: memref<1x1x16xf32, #tpu.memory_space<vmem>>) attributes {dimension_semantics = [#tpu.dimension_semantics<parallel>, #tpu.dimension_semantics<parallel>], iteration_bounds = array<i64: 2, 1>, scalar_prefetch = 0 : i64, scratch_operands = 0 : i64, tpu.core_type = #tpu.core_type<tc>, window_params = [{transform_indices = @transform_0, window_bounds = array<i64: 1, 64, 16>}, {pipeline_mode = #tpu.pipeline_mode<synchronous>, transform_indices = @transform_1, window_bounds = array<i64: 256, 64>}, {pipeline_mode = #tpu.pipeline_mode<synchronous>, transform_indices = @transform_2, window_bounds = array<i64: 256, 256>}, {pipeline_mode = #tpu.pipeline_mode<synchronous>, transform_indices = @transform_3, window_bounds = array<i64: 256, 3>}, {transform_indices = @transform_4, window_bounds = array<i64: 1>}, {transform_indices = @transform_5, window_bounds = array<i64: 1, 1, 16>}]} {
    %c0 = arith.constant 0 : index
    %c0_0 = arith.constant 0 : index
    %c0_1 = arith.constant 0 : index
    %0 = vector.load %arg2[%c0, %c0_0, %c0_1] : memref<1x64x16xf32, #tpu.memory_space<vmem>>, vector<1x64x16xf32>
    %1 = vector.shape_cast %0 : vector<1x64x16xf32> to vector<64x16xf32>
    %c0_2 = arith.constant 0 : index
    %c0_3 = arith.constant 0 : index
    %2 = vector.load %arg5[%c0_2, %c0_3] : memref<256x3xf32, #tpu.memory_space<vmem>>, vector<256x1xf32>
    %c0_4 = arith.constant 0 : index
    %c1 = arith.constant 1 : index
    %3 = vector.load %arg5[%c0_4, %c1] : memref<256x3xf32, #tpu.memory_space<vmem>>, vector<256x1xf32>
    %c0_5 = arith.constant 0 : index
    %c2 = arith.constant 2 : index
    %4 = vector.load %arg5[%c0_5, %c2] : memref<256x3xf32, #tpu.memory_space<vmem>>, vector<256x1xf32>
    %c0_6 = arith.constant 0 : index
    %c0_7 = arith.constant 0 : index
    %5 = vector.load %arg3[%c0_6, %c0_7] : memref<256x64xf32, #tpu.memory_space<vmem>>, vector<256x64xf32>
    %cst = arith.constant dense<0.000000e+00> : vector<256x16xf32>
    %6 = tpu.matmul %5, %1, %cst {dimension_numbers = #tpu.dot_dimension_numbers<[1], [0], [0], [1], [0, 0, 1, 1], [], []>} : vector<256x64xf32>, vector<64x16xf32>, vector<256x16xf32> -> vector<256x16xf32>
    %7 = vector.broadcast %2 : vector<256x1xf32> to vector<256x16xf32>
    %8 = arith.addf %6, %7 : vector<256x16xf32>
    %cst_8 = arith.constant 0.000000e+00 : f32
    %9 = vector.broadcast %cst_8 : f32 to vector<256x16xf32>
    %10 = arith.maximumf %8, %9 : vector<256x16xf32>
    %c0_9 = arith.constant 0 : index
    %c0_10 = arith.constant 0 : index
    %11 = vector.load %arg4[%c0_9, %c0_10] : memref<256x256xf32, #tpu.memory_space<vmem>>, vector<256x256xf32>
    %cst_11 = arith.constant dense<0.000000e+00> : vector<256x16xf32>
    %12 = tpu.matmul %11, %10, %cst_11 {dimension_numbers = #tpu.dot_dimension_numbers<[1], [0], [0], [1], [0, 0, 1, 1], [], []>} : vector<256x256xf32>, vector<256x16xf32>, vector<256x16xf32> -> vector<256x16xf32>
    %13 = vector.broadcast %3 : vector<256x1xf32> to vector<256x16xf32>
    %14 = arith.addf %12, %13 : vector<256x16xf32>
    %cst_12 = arith.constant 0.000000e+00 : f32
    %15 = vector.broadcast %cst_12 : f32 to vector<256x16xf32>
    %16 = arith.maximumf %14, %15 : vector<256x16xf32>
    %17 = vector.broadcast %4 : vector<256x1xf32> to vector<256x16xf32>
    %18 = arith.mulf %16, %17 : vector<256x16xf32>
    %cst_13 = arith.constant dense<0.000000e+00> : vector<16xf32>
    %19 = vector.multi_reduction <add>, %18, %cst_13 [0] : vector<256x16xf32> to vector<16xf32>
    %20 = vector.shape_cast %19 : vector<16xf32> to vector<1x16xf32>
    %c0_14 = arith.constant 0 : index
    %21 = memref.load %arg6[%c0_14] : memref<1xf32, #tpu.memory_space<smem>>
    %22 = vector.broadcast %21 : f32 to vector<1x16xf32>
    %23 = arith.addf %20, %22 : vector<1x16xf32>
    %24 = vector.shape_cast %23 : vector<1x16xf32> to vector<1x1x16xf32>
    %c0_15 = arith.constant 0 : index
    %c0_16 = arith.constant 0 : index
    %c0_17 = arith.constant 0 : index
    %25 = vector.load %arg7[%c0_15, %c0_16, %c0_17] : memref<1x1x16xf32, #tpu.memory_space<vmem>>, vector<1x1x16xf32>
    tpu.vector_store %arg7[%c0_15, %c0_16, %c0_17], %24 {strides = array<i32>} : memref<1x1x16xf32, #tpu.memory_space<vmem>>, vector<1x1x16xf32>,
    return
  }
  func.func @transform_0(%arg0: i32, %arg1: i32) -> (i32, i32, i32) {
    %c0_i32 = arith.constant 0 : i32
    %c0_i32_0 = arith.constant 0 : i32
    return %arg0, %c0_i32, %arg1 : i32, i32, i32
  }
  func.func @transform_1(%arg0: i32, %arg1: i32) -> (i32, i32) {
    %c0_i32 = arith.constant 0 : i32
    %c0_i32_0 = arith.constant 0 : i32
    %c0_i32_1 = arith.constant 0 : i32
    return %c0_i32, %c0_i32_0 : i32, i32
  }
  func.func @transform_2(%arg0: i32, %arg1: i32) -> (i32, i32) {
    %c0_i32 = arith.constant 0 : i32
    %c0_i32_0 = arith.constant 0 : i32
    %c0_i32_1 = arith.constant 0 : i32
    return %c0_i32, %c0_i32_0 : i32, i32
  }
  func.func @transform_3(%arg0: i32, %arg1: i32) -> (i32, i32) {
    %c0_i32 = arith.constant 0 : i32
    %c0_i32_0 = arith.constant 0 : i32
    %c0_i32_1 = arith.constant 0 : i32
    return %c0_i32, %c0_i32_0 : i32, i32
  }
  func.func @transform_4(%arg0: i32, %arg1: i32) -> i32 {
    %c0_i32 = arith.constant 0 : i32
    %c0_i32_0 = arith.constant 0 : i32
    return %c0_i32 : i32
  }
  func.func @transform_5(%arg0: i32, %arg1: i32) -> (i32, i32, i32) {
    %c0_i32 = arith.constant 0 : i32
    %c0_i32_0 = arith.constant 0 : i32
    return %arg0, %c0_i32, %arg1 : i32, i32, i32
  }
}

</mosaic_0001>

<llo_original>
// kernel: tpu_custom_call.1
$region0: #{tpu_custom_call.1}
  #allocation0 [shape = 'u32[]', space=smem, size = 0x4, offset = 0x4, fixed_abs, tag = 'smem constant byte address 0x4 - core index']
  #allocation1 [shape = 'u32[144,128]{1,0:T(1,128)}', space=vmem, size = 0x12000, scoped, tag = 'internal scratch']
  #allocation2 [shape = 'f32[1]{0:T(128)S(6)}', space=smem, size = 0x200, scoped, tag = 'scoped memory for tpu_custom_call.1']
  %s0 = inlined_call_operand.vmem [shape: f32[2,64,16], index: 0, kind: input, shape index: {}]
  %s1 = inlined_call_operand.vmem [shape: f32[256,64], index: 1, kind: input, shape index: {}]
  %s2 = inlined_call_operand.vmem [shape: f32[256,256], index: 2, kind: input, shape index: {}]
  %s3 = inlined_call_operand.vmem [shape: f32[256,3], index: 3, kind: input, shape index: {}]
  %s4 = inlined_call_operand.<no memory space> [shape: f32[1], index: 4, kind: input, shape index: {}]
  %s5 = inlined_call_operand.hbm [shape: f32[2,1,16], index: 5, kind: output, shape index: {}]
  %s6 = sld [smem:[#allocation0]]
  $region53: #{tpu_custom_call.1} parent=0
    _
  %s8 = ssub.s32 1, %s6
  %s9 = scalar_select 0, %s8, %s6
  %10 = sst [smem:[#allocation2]] %s4
  $region1: #{tpu_custom_call.1} parent=0
    #allocation3 [shape = 'u8[1024]{0}', space=vmem, size = 0x400, scoped, tag = 'output window, operand 0']
    #allocation4 [shape = 's32[2]{0}', space=sflag, size = 0x8, scoped, tag = 'scoped memory for tpu_custom_call.1']
    %11 = vsyncpa [#allocation4], 0
    %s12 = scalar_lea.sflag [#allocation4], 1
    %13 = vsyncpa %s12, 0
    loop: start=0, step=1, limit=4
    $region2: #{tpu_custom_call.1} parent=1 // loop_pre_header
      _
    $region3: #{tpu_custom_call.1} parent=1 // loop_header
      %s15 = sphi 0, %s19
      %p16 = scmp.ge.s32.totalorder %s15, 4
      %s22 = sphi 0, %s34
      %s23 = sphi 0, %s30
      %s24 = sphi 0, %s22
      %s25 = sphi 0, %s23
      %s26 = sphi 0, %s24
      %s27 = sphi 0, %s25
      %s39 = sphi 0, %s41
      %s42 = sphi 0, %s39
      %s43 = sphi 0, %s42
      %s59 = sphi 0, %s43
      %s63 = sphi 0, %s63
      %s65 = sphi 0, %s63
      %s66 = sphi 0, %s65
      %s80 = sphi 0, %s66
      %s84 = sphi 0, %s84
      %s86 = sphi 0, %s84
      %s87 = sphi 0, %s86
      %s101 = sphi 0, %s87
      %s105 = sphi 0, %s105
      %s107 = sphi 0, %s105
      %s108 = sphi 0, %s107
      %s122 = sphi 0, %s108
      %s126 = sphi 0, %s126
      %s128 = sphi 0, %s126
      %s129 = sphi 0, %s128
      %s143 = sphi 0, %s129
      %s151 = sphi 0, %s153
      %s154 = sphi 0, %s151
      %s155 = sphi 0, %s154
      %s171 = sphi 0, %s155
    $region4: #{tpu_custom_call.1} parent=1 // loop_header_branch
      %18 = sbr.rel (%p16) target = $region8
    $region5: #{tpu_custom_call.1} parent=1 // loop_body
      %s20 = ssub.s32 %s15, 1
      %s21 = ssub.s32 %s15, 2
      %s28 = sadd.s32 1, %s23
      %p29 = scmp.ge.s32.totalorder %s28, 1
      %s30 = scalar_select %p29, 0, %s28
      %s31 = sadd.s32 1, %s22
      %s32 = scalar_select %p29, %s31, %s22
      %p33 = scmp.ge.s32.totalorder %s32, 2
      %s34 = scalar_select %p33, 0, %s32
      %s35 = ssub.s32 %s22, %s34
      %s36 = ssub.s32 %s23, %s30
      %s37 = sor.u32 %s35, %s36
      %p38 = scmp.eq.s32.totalorder %s37, 0
      %s40 = sadd.s32 %s39, 1
      %s41 = scalar_select %p38, %s39, %s40
      %p44 = pneg %p38
      %p45 = scmp.eq.s32.totalorder %s15, 1
      %p46 = por %p44, %p45
      %p47 = scmp.ne.s32.totalorder %s39, %s42
      %p48 = scmp.eq.s32.totalorder %s15, 0
      %p49 = por %p47, %p48
      %p50 = scmp.ne.s32.totalorder %s39, %s42
      %p51 = scmp.eq.s32.totalorder %s20, 1
      %p52 = por %p50, %p51
      %p53 = scmp.ne.s32.totalorder %s42, %s43
      %p54 = scmp.eq.s32.totalorder %s20, 0
      %p55 = por %p53, %p54
      %p56 = scmp.ne.s32.totalorder %s42, %s43
      %p57 = scmp.eq.s32.totalorder %s21, 1
      %p58 = por %p56, %p57
      %p60 = scmp.ne.s32.totalorder %s43, %s59
      %p61 = scmp.eq.s32.totalorder %s21, 0
      %p62 = por %p60, %p61
      %s64 = sadd.s32 %s63, 1
      %p67 = scmp.eq.s32.totalorder %s15, 1
      %p68 = scmp.ne.s32.totalorder %s63, %s65
      %p69 = scmp.eq.s32.totalorder %s15, 0
      %p70 = por %p68, %p69
      %p71 = scmp.ne.s32.totalorder %s63, %s65
      %p72 = scmp.eq.s32.totalorder %s20, 1
      %p73 = por %p71, %p72
      %p74 = scmp.ne.s32.totalorder %s65, %s66
      %p75 = scmp.eq.s32.totalorder %s20, 0
      %p76 = por %p74, %p75
      %p77 = scmp.ne.s32.totalorder %s65, %s66
      %p78 = scmp.eq.s32.totalorder %s21, 1
      %p79 = por %p77, %p78
      %p81 = scmp.ne.s32.totalorder %s66, %s80
      %p82 = scmp.eq.s32.totalorder %s21, 0
      %p83 = por %p81, %p82
      %s85 = sadd.s32 %s84, 1
      %p88 = scmp.eq.s32.totalorder %s15, 1
      %p89 = scmp.ne.s32.totalorder %s84, %s86
      %p90 = scmp.eq.s32.totalorder %s15, 0
      %p91 = por %p89, %p90
      %p92 = scmp.ne.s32.totalorder %s84, %s86
      %p93 = scmp.eq.s32.totalorder %s20, 1
      %p94 = por %p92, %p93
      %p95 = scmp.ne.s32.totalorder %s86, %s87
      %p96 = scmp.eq.s32.totalorder %s20, 0
      %p97 = por %p95, %p96
      %p98 = scmp.ne.s32.totalorder %s86, %s87
      %p99 = scmp.eq.s32.totalorder %s21, 1
      %p100 = por %p98, %p99
      %p102 = scmp.ne.s32.totalorder %s87, %s101
      %p103 = scmp.eq.s32.totalorder %s21, 0
      %p104 = por %p102, %p103
      %s106 = sadd.s32 %s105, 1
      %p109 = scmp.eq.s32.totalorder %s15, 1
      %p110 = scmp.ne.s32.totalorder %s105, %s107
      %p111 = scmp.eq.s32.totalorder %s15, 0
      %p112 = por %p110, %p111
      %p113 = scmp.ne.s32.totalorder %s105, %s107
      %p114 = scmp.eq.s32.totalorder %s20, 1
      %p115 = por %p113, %p114
      %p116 = scmp.ne.s32.totalorder %s107, %s108
      %p117 = scmp.eq.s32.totalorder %s20, 0
      %p118 = por %p116, %p117
      %p119 = scmp.ne.s32.totalorder %s107, %s108
      %p120 = scmp.eq.s32.totalorder %s21, 1
      %p121 = por %p119, %p120
      %p123 = scmp.ne.s32.totalorder %s108, %s122
      %p124 = scmp.eq.s32.totalorder %s21, 0
      %p125 = por %p123, %p124
      %s127 = sadd.s32 %s126, 1
      %p130 = scmp.eq.s32.totalorder %s15, 1
      %p131 = scmp.ne.s32.totalorder %s126, %s128
      %p132 = scmp.eq.s32.totalorder %s15, 0
      %p133 = por %p131, %p132
      %p134 = scmp.ne.s32.totalorder %s126, %s128
      %p135 = scmp.eq.s32.totalorder %s20, 1
      %p136 = por %p134, %p135
      %p137 = scmp.ne.s32.totalorder %s128, %s129
      %p138 = scmp.eq.s32.totalorder %s20, 0
      %p139 = por %p137, %p138
      %p140 = scmp.ne.s32.totalorder %s128, %s129
      %p141 = scmp.eq.s32.totalorder %s21, 1
      %p142 = por %p140, %p141
      %p144 = scmp.ne.s32.totalorder %s129, %s143
      %p145 = scmp.eq.s32.totalorder %s21, 0
      %p146 = por %p144, %p145
      %s147 = ssub.s32 %s22, %s34
      %s148 = ssub.s32 %s23, %s30
      %s149 = sor.u32 %s147, %s148
      %p150 = scmp.eq.s32.totalorder %s149, 0
      %s152 = sadd.s32 %s151, 1
      %s153 = scalar_select %p150, %s151, %s152
      %p156 = pneg %p150
      %p157 = scmp.eq.s32.totalorder %s15, 1
      %p158 = por %p156, %p157
      %p159 = scmp.ne.s32.totalorder %s151, %s154
      %p160 = scmp.eq.s32.totalorder %s15, 0
      %p161 = por %p159, %p160
      %p162 = scmp.ne.s32.totalorder %s151, %s154
      %p163 = scmp.eq.s32.totalorder %s20, 1
      %p164 = por %p162, %p163
      %p165 = scmp.ne.s32.totalorder %s154, %s155
      %p166 = scmp.eq.s32.totalorder %s20, 0
      %p167 = por %p165, %p166
      %p168 = scmp.ne.s32.totalorder %s154, %s155
      %p169 = scmp.eq.s32.totalorder %s21, 1
      %p170 = por %p168, %p169
      %p172 = scmp.ne.s32.totalorder %s155, %s171
      %p173 = scmp.eq.s32.totalorder %s21, 0
      %p174 = por %p172, %p173
      %p175 = scmp.le.s32.totalorder 1, %s15
      %p176 = scmp.lt.s32.totalorder %s15, 3
      %p177 = pnand %p175, %p176
      %p178 = pneg %p177
      // Predicated region
      $region9: #{tpu_custom_call.1} parent=5 // pred_check
        _
      $region10: #{tpu_custom_call.1} parent=5 // pred_check_branch
        %180 = sbr.rel (%p177) target = $region12
      $region11: #{tpu_custom_call.1} parent=5 // pred_region
        %s181 = ssub.s32 %s15, 1
        // Predicated region
        $region13: #{tpu_custom_call.1} parent=11 // pred_check
          %p182 = pneg %p76
        $region14: #{tpu_custom_call.1} parent=11 // pred_check_branch
          %184 = sbr.rel (%p182) target = $region16
        $region15: #{tpu_custom_call.1} parent=11 // pred_region
          _
        $region16: #{tpu_custom_call.1} parent=11 // pred_fallthru
          _
        // Predicated region
        $region17: #{tpu_custom_call.1} parent=11 // pred_check
          %p185 = pneg %p97
        $region18: #{tpu_custom_call.1} parent=11 // pred_check_branch
          %187 = sbr.rel (%p185) target = $region20
        $region19: #{tpu_custom_call.1} parent=11 // pred_region
          _
        $region20: #{tpu_custom_call.1} parent=11 // pred_fallthru
          _
        // Predicated region
        $region21: #{tpu_custom_call.1} parent=11 // pred_check
          %p188 = pneg %p118
        $region22: #{tpu_custom_call.1} parent=11 // pred_check_branch
          %190 = sbr.rel (%p188) target = $region24
        $region23: #{tpu_custom_call.1} parent=11 // pred_region
          _
        $region24: #{tpu_custom_call.1} parent=11 // pred_fallthru
          _
        // Predicated region
        $region25: #{tpu_custom_call.1} parent=11 // pred_check
          %p191 = pneg %p139
        $region26: #{tpu_custom_call.1} parent=11 // pred_check_branch
          %193 = sbr.rel (%p191) target = $region28
        $region27: #{tpu_custom_call.1} parent=11 // pred_region
          _
        $region28: #{tpu_custom_call.1} parent=11 // pred_fallthru
          _
      $region12: #{tpu_custom_call.1} parent=5 // pred_fallthru
        _
      %p194 = scmp.lt.s32.totalorder %s15, 2
      // Predicated region
      $region29: #{tpu_custom_call.1} parent=5 // pred_check
        %p195 = pneg %p194
      $region30: #{tpu_custom_call.1} parent=5 // pred_check_branch
        %197 = sbr.rel (%p195) target = $region32
      $region31: #{tpu_custom_call.1} parent=5 // pred_region
        // Predicated region
        $region33: #{tpu_custom_call.1} parent=31 // pred_check
          %p198 = pneg %p49
        $region34: #{tpu_custom_call.1} parent=31 // pred_check_branch
          %200 = sbr.rel (%p198) target = $region36
        $region35: #{tpu_custom_call.1} parent=31 // pred_region
          %p201 = scmp.lt.s32.totalorder %s22, 1
          %s202 = scalar_select %p201, %s22, 1
          %p203 = scmp.lt.s32.totalorder %s23, 0
          %s204 = scalar_select %p203, %s23, 0
          %s205 = smul.addr %s202, 8
          %s206 = sadd.s32 %s204, %s205
          %s207 = smul.addr %s206, 8
          %s208 = scalar_lea.vmem %s0, %s207
        $region36: #{tpu_custom_call.1} parent=31 // pred_fallthru
          _
      $region32: #{tpu_custom_call.1} parent=5 // pred_fallthru
        _
      %p209 = scmp.le.s32.totalorder 1, %s15
      %p210 = scmp.lt.s32.totalorder %s15, 3
      %p211 = pnand %p209, %p210
      %p212 = pneg %p211
      // Predicated region
      $region37: #{tpu_custom_call.1} parent=5 // pred_check
        _
      $region38: #{tpu_custom_call.1} parent=5 // pred_check_branch
        %214 = sbr.rel (%p211) target = $region40
      $region39: #{tpu_custom_call.1} parent=5 // pred_region
        %s215 = ssub.s32 %s15, 1
        %p216 = scmp.lt.s32.totalorder %s24, 1
        %s217 = scalar_select %p216, %s24, 1
        %p218 = scmp.lt.s32.totalorder %s25, 0
        %s219 = scalar_select %p218, %s25, 0
        %s220 = smul.addr %s217, 8
        %s221 = sadd.s32 %s219, %s220
        %s222 = smul.addr %s221, 8
        %s223 = scalar_lea.vmem %s0, %s222
        %p224 = pneg %p55
        %p225 = pneg %p52
        %p226 = pneg %p76
        %p227 = pneg %p73
        %p228 = pneg %p97
        %p229 = pneg %p94
        %p230 = pneg %p118
        %p231 = pneg %p115
        %p232 = pneg %p139
        %p233 = pneg %p136
        %p234 = pneg %p167
        %p235 = pneg %p164
        %s236 = sand.u32 %s154, 1
        %s237 = scalar_lea.sflag [#allocation4], %s236
        %s238 = sand.u32 %s154, 1
        %s239 = scalar_lea.vmem [#allocation3], %s238
        %p240 = scmp.lt.s32.totalorder %s24, 1
        %s241 = scalar_select %p240, %s24, 1
        %p242 = scmp.lt.s32.totalorder %s25, 0
        %s243 = scalar_select %p242, %s25, 0
        %s244 = smul.addr %s241, 8
        %s245 = sadd.s32 %s243, %s244
        %s246 = smul.addr %s245, 8
        %s247 = scalar_lea.vmem %s0, %s246
        %v248 = vld [vmem:[%s247] sm:$0xff]
        %v249 = vld [vmem:[%s247 + $0x8] sm:$0xff]
        %v250 = vld [vmem:[%s247 + $0x10] sm:$0xff]
        %v251 = vld [vmem:[%s247 + $0x18] sm:$0xff]
        %v252 = vld [vmem:[%s247 + $0x20] sm:$0xff]
        %v253 = vld [vmem:[%s247 + $0x28] sm:$0xff]
        %v254 = vld [vmem:[%s247 + $0x30] sm:$0xff]
        %v255 = vld [vmem:[%s247 + $0x38] sm:$0xff]
        %v256 = vld [vmem:[%s3] sm:$0xff]
        %v257 = vld [vmem:[%s3 + $0x8] sm:$0xff]
        %v258 = vld [vmem:[%s3 + $0x10] sm:$0xff]
        %v259 = vld [vmem:[%s3 + $0x18] sm:$0xff]
        %v260 = vld [vmem:[%s3 + $0x20] sm:$0xff]
        %v261 = vld [vmem:[%s3 + $0x28] sm:$0xff]
        %v262 = vld [vmem:[%s3 + $0x30] sm:$0xff]
        %v263 = vld [vmem:[%s3 + $0x38] sm:$0xff]
        %v264 = vld [vmem:[%s3 + $0x40] sm:$0xff]
        %v265 = vld [vmem:[%s3 + $0x48] sm:$0xff]
        %v266 = vld [vmem:[%s3 + $0x50] sm:$0xff]
        %v267 = vld [vmem:[%s3 + $0x58] sm:$0xff]
        %v268 = vld [vmem:[%s3 + $0x60] sm:$0xff]
        %v269 = vld [vmem:[%s3 + $0x68] sm:$0xff]
        %v270 = vld [vmem:[%s3 + $0x70] sm:$0xff]
        %v271 = vld [vmem:[%s3 + $0x78] sm:$0xff]
        %v272 = vld [vmem:[%s3 + $0x80] sm:$0xff]
        %v273 = vld [vmem:[%s3 + $0x88] sm:$0xff]
        %v274 = vld [vmem:[%s3 + $0x90] sm:$0xff]
        %v275 = vld [vmem:[%s3 + $0x98] sm:$0xff]
        %v276 = vld [vmem:[%s3 + $0xa0] sm:$0xff]
        %v277 = vld [vmem:[%s3 + $0xa8] sm:$0xff]
        %v278 = vld [vmem:[%s3 + $0xb0] sm:$0xff]
        %v279 = vld [vmem:[%s3 + $0xb8] sm:$0xff]
        %v280 = vld [vmem:[%s3 + $0xc0] sm:$0xff]
        %v281 = vld [vmem:[%s3 + $0xc8] sm:$0xff]
        %v282 = vld [vmem:[%s3 + $0xd0] sm:$0xff]
        %v283 = vld [vmem:[%s3 + $0xd8] sm:$0xff]
        %v284 = vld [vmem:[%s3 + $0xe0] sm:$0xff]
        %v285 = vld [vmem:[%s3 + $0xe8] sm:$0xff]
        %v286 = vld [vmem:[%s3 + $0xf0] sm:$0xff]
        %v287 = vld [vmem:[%s3 + $0xf8] sm:$0xff]
        %v288 = vld [vmem:[%s1] sm:$0xff]
        %v289 = vld [vmem:[%s1 + $0x8] sm:$0xff]
        %v290 = vld [vmem:[%s1 + $0x10] sm:$0xff]
        %v291 = vld [vmem:[%s1 + $0x18] sm:$0xff]
        %v292 = vld [vmem:[%s1 + $0x20] sm:$0xff]
        %v293 = vld [vmem:[%s1 + $0x28] sm:$0xff]
        %v294 = vld [vmem:[%s1 + $0x30] sm:$0xff]
        %v295 = vld [vmem:[%s1 + $0x38] sm:$0xff]
        %v296 = vld [vmem:[%s1 + $0x40] sm:$0xff]
        %v297 = vld [vmem:[%s1 + $0x48] sm:$0xff]
        %v298 = vld [vmem:[%s1 + $0x50] sm:$0xff]
        %v299 = vld [vmem:[%s1 + $0x58] sm:$0xff]
        %v300 = vld [vmem:[%s1 + $0x60] sm:$0xff]
        %v301 = vld [vmem:[%s1 + $0x68] sm:$0xff]
        %v302 = vld [vmem:[%s1 + $0x70] sm:$0xff]
        %v303 = vld [vmem:[%s1 + $0x78] sm:$0xff]
        %v304 = vld [vmem:[%s1 + $0x80] sm:$0xff]
        %v305 = vld [vmem:[%s1 + $0x88] sm:$0xff]
        %v306 = vld [vmem:[%s1 + $0x90] sm:$0xff]
        %v307 = vld [vmem:[%s1 + $0x98] sm:$0xff]
        %v308 = vld [vmem:[%s1 + $0xa0] sm:$0xff]
        %v309 = vld [vmem:[%s1 + $0xa8] sm:$0xff]
        %v310 = vld [vmem:[%s1 + $0xb0] sm:$0xff]
        %v311 = vld [vmem:[%s1 + $0xb8] sm:$0xff]
        %v312 = vld [vmem:[%s1 + $0xc0] sm:$0xff]
        %v313 = vld [vmem:[%s1 + $0xc8] sm:$0xff]
        %v314 = vld [vmem:[%s1 + $0xd0] sm:$0xff]
        %v315 = vld [vmem:[%s1 + $0xd8] sm:$0xff]
        %v316 = vld [vmem:[%s1 + $0xe0] sm:$0xff]
        %v317 = vld [vmem:[%s1 + $0xe8] sm:$0xff]
        %v318 = vld [vmem:[%s1 + $0xf0] sm:$0xff]
        %v319 = vld [vmem:[%s1 + $0xf8] sm:$0xff]
        %321 = vset.pattern.permute.xlu0 0
        %322 = vperm.xlu0 %321, %v256
        %v323 = vpop.permute.xlu0 %322
        %326 = vset.pattern.permute.xlu0 0
        %327 = vperm.xlu0 %326, %v257
        %v328 = vpop.permute.xlu0 %327
        %331 = vset.pattern.permute.xlu0 0
        %332 = vperm.xlu0 %331, %v258
        %v333 = vpop.permute.xlu0 %332
        %336 = vset.pattern.permute.xlu0 0
        %337 = vperm.xlu0 %336, %v259
        %v338 = vpop.permute.xlu0 %337
        %341 = vset.pattern.permute.xlu0 0
        %342 = vperm.xlu0 %341, %v260
        %v343 = vpop.permute.xlu0 %342
        %346 = vset.pattern.permute.xlu0 0
        %347 = vperm.xlu0 %346, %v261
        %v348 = vpop.permute.xlu0 %347
        %351 = vset.pattern.permute.xlu0 0
        %352 = vperm.xlu0 %351, %v262
        %v353 = vpop.permute.xlu0 %352
        %356 = vset.pattern.permute.xlu0 0
        %357 = vperm.xlu0 %356, %v263
        %v358 = vpop.permute.xlu0 %357
        %361 = vset.pattern.permute.xlu0 0
        %362 = vperm.xlu0 %361, %v264
        %v363 = vpop.permute.xlu0 %362
        %366 = vset.pattern.permute.xlu0 0
        %367 = vperm.xlu0 %366, %v265
        %v368 = vpop.permute.xlu0 %367
        %371 = vset.pattern.permute.xlu0 0
        %372 = vperm.xlu0 %371, %v266
        %v373 = vpop.permute.xlu0 %372
        %376 = vset.pattern.permute.xlu0 0
        %377 = vperm.xlu0 %376, %v267
        %v378 = vpop.permute.xlu0 %377
        %381 = vset.pattern.permute.xlu0 0
        %382 = vperm.xlu0 %381, %v268
        %v383 = vpop.permute.xlu0 %382
        %386 = vset.pattern.permute.xlu0 0
        %387 = vperm.xlu0 %386, %v269
        %v388 = vpop.permute.xlu0 %387
        %391 = vset.pattern.permute.xlu0 0
        %392 = vperm.xlu0 %391, %v270
        %v393 = vpop.permute.xlu0 %392
        %396 = vset.pattern.permute.xlu0 0
        %397 = vperm.xlu0 %396, %v271
        %v398 = vpop.permute.xlu0 %397
        %401 = vset.pattern.permute.xlu0 0
        %402 = vperm.xlu0 %401, %v272
        %v403 = vpop.permute.xlu0 %402
        %406 = vset.pattern.permute.xlu0 0
        %407 = vperm.xlu0 %406, %v273
        %v408 = vpop.permute.xlu0 %407
        %411 = vset.pattern.permute.xlu0 0
        %412 = vperm.xlu0 %411, %v274
        %v413 = vpop.permute.xlu0 %412
        %416 = vset.pattern.permute.xlu0 0
        %417 = vperm.xlu0 %416, %v275
        %v418 = vpop.permute.xlu0 %417
        %421 = vset.pattern.permute.xlu0 0
        %422 = vperm.xlu0 %421, %v276
        %v423 = vpop.permute.xlu0 %422
        %426 = vset.pattern.permute.xlu0 0
        %427 = vperm.xlu0 %426, %v277
        %v428 = vpop.permute.xlu0 %427
        %431 = vset.pattern.permute.xlu0 0
        %432 = vperm.xlu0 %431, %v278
        %v433 = vpop.permute.xlu0 %432
        %436 = vset.pattern.permute.xlu0 0
        %437 = vperm.xlu0 %436, %v279
        %v438 = vpop.permute.xlu0 %437
        %441 = vset.pattern.permute.xlu0 0
        %442 = vperm.xlu0 %441, %v280
        %v443 = vpop.permute.xlu0 %442
        %446 = vset.pattern.permute.xlu0 0
        %447 = vperm.xlu0 %446, %v281
        %v448 = vpop.permute.xlu0 %447
        %451 = vset.pattern.permute.xlu0 0
        %452 = vperm.xlu0 %451, %v282
        %v453 = vpop.permute.xlu0 %452
        %456 = vset.pattern.permute.xlu0 0
        %457 = vperm.xlu0 %456, %v283
        %v458 = vpop.permute.xlu0 %457
        %461 = vset.pattern.permute.xlu0 0
        %462 = vperm.xlu0 %461, %v284
        %v463 = vpop.permute.xlu0 %462
        %466 = vset.pattern.permute.xlu0 0
        %467 = vperm.xlu0 %466, %v285
        %v468 = vpop.permute.xlu0 %467
        %471 = vset.pattern.permute.xlu0 0
        %472 = vperm.xlu0 %471, %v286
        %v473 = vpop.permute.xlu0 %472
        %476 = vset.pattern.permute.xlu0 0
        %477 = vperm.xlu0 %476, %v287
        %v478 = vpop.permute.xlu0 %477
        %vm480 = vcmask 523264
        %v482 = vsel %vm480, %v288, 0
        %v485 = vsel %vm480, %v289, 0
        %v488 = vsel %vm480, %v290, 0
        %v491 = vsel %vm480, %v291, 0
        %v494 = vsel %vm480, %v292, 0
        %v497 = vsel %vm480, %v293, 0
        %v500 = vsel %vm480, %v294, 0
        %v503 = vsel %vm480, %v295, 0
        %v506 = vsel %vm480, %v296, 0
        %v509 = vsel %vm480, %v297, 0
        %v512 = vsel %vm480, %v298, 0
        %v515 = vsel %vm480, %v299, 0
        %v518 = vsel %vm480, %v300, 0
        %v521 = vsel %vm480, %v301, 0
        %v524 = vsel %vm480, %v302, 0
        %v527 = vsel %vm480, %v303, 0
        %v530 = vsel %vm480, %v304, 0
        %v533 = vsel %vm480, %v305, 0
        %v536 = vsel %vm480, %v306, 0
        %v539 = vsel %vm480, %v307, 0
        %v542 = vsel %vm480, %v308, 0
        %v545 = vsel %vm480, %v309, 0
        %v548 = vsel %vm480, %v310, 0
        %v551 = vsel %vm480, %v311, 0
        %v554 = vsel %vm480, %v312, 0
        %v557 = vsel %vm480, %v313, 0
        %v560 = vsel %vm480, %v314, 0
        %v563 = vsel %vm480, %v315, 0
        %v566 = vsel %vm480, %v316, 0
        %v569 = vsel %vm480, %v317, 0
        %v572 = vsel %vm480, %v318, 0
        %v575 = vsel %vm480, %v319, 0
        %577 = vmatprep.subr.mxu0 0.0
        %578 = vmatpush1.msra.mxu0 %v248
        %579 = vmatprep.subr.mxu0 0.0
        %580 = vmatpush1.msra.mxu0 %v249
        %581 = vmatprep.subr.mxu0 0.0
        %582 = vmatpush1.msra.mxu0 %v250
        %583 = vmatprep.subr.mxu0 0.0
        %584 = vmatpush1.msra.mxu0 %v251
        %585 = vmatprep.subr.mxu0 0.0
        %586 = vmatpush1.msra.mxu0 %v252
        %587 = vmatprep.subr.mxu0 0.0
        %588 = vmatpush1.msra.mxu0 %v253
        %589 = vmatprep.subr.mxu0 0.0
        %590 = vmatpush1.msra.mxu0 %v254
        %591 = vmatprep.subr.mxu0 0.0
        %592 = vmatpush1.msra.mxu0 %v255
        %593 = vmatprep.subr.mxu0 0.0
        %594 = vmatpush1.msra.mxu0 0.0
        %595 = vmatprep.subr.mxu0 0.0
        %596 = vmatpush1.msra.mxu0 0.0
        %597 = vmatprep.subr.mxu0 0.0
        %598 = vmatpush1.msra.mxu0 0.0
        %599 = vmatprep.subr.mxu0 0.0
        %600 = vmatpush1.msra.mxu0 0.0
        %601 = vmatprep.subr.mxu0 0.0
        %602 = vmatpush1.msra.mxu0 0.0
        %603 = vmatprep.subr.mxu0 0.0
        %604 = vmatpush1.msra.mxu0 0.0
        %605 = vmatprep.subr.mxu0 0.0
        %606 = vmatpush1.msra.mxu0 0.0
        %607 = vmatprep.subr.mxu0 0.0
        %608 = vmatpush1.msra.mxu0 0.0
        %609 = vmatprep.subr.mxu0 0.0
        %610 = vmatpush1.msra.mxu0 0.0
        %611 = vmatprep.subr.mxu0 0.0
        %612 = vmatpush1.msra.mxu0 0.0
        %613 = vmatprep.subr.mxu0 0.0
        %614 = vmatpush1.msra.mxu0 0.0
        %615 = vmatprep.subr.mxu0 0.0
        %616 = vmatpush1.msra.mxu0 0.0
        %617 = vmatprep.subr.mxu0 0.0
        %618 = vmatpush1.msra.mxu0 0.0
        %619 = vmatprep.subr.mxu0 0.0
        %620 = vmatpush1.msra.mxu0 0.0
        %621 = vmatprep.subr.mxu0 0.0
        %622 = vmatpush1.msra.mxu0 0.0
        %623 = vmatprep.subr.mxu0 0.0
        %624 = vmatpush1.msra.mxu0 0.0
        %625 = vmatprep.subr.mxu0 0.0
        %626 = vmatpush1.msra.mxu0 0.0
        %627 = vmatprep.subr.mxu0 0.0
        %628 = vmatpush1.msra.mxu0 0.0
        %629 = vmatprep.subr.mxu0 0.0
        %630 = vmatpush1.msra.mxu0 0.0
        %631 = vmatprep.subr.mxu0 0.0
        %632 = vmatpush1.msra.mxu0 0.0
        %633 = vmatprep.subr.mxu0 0.0
        %634 = vmatpush1.msra.mxu0 0.0
        %635 = vmatprep.subr.mxu0 0.0
        %636 = vmatpush1.msra.mxu0 0.0
        %637 = vmatprep.subr.mxu0 0.0
        %638 = vmatpush1.msra.mxu0 0.0
        %639 = vmatprep.subr.mxu0 0.0
        %640 = vmatpush1.msra.mxu0 0.0
        %641 = vmatprep.mubr.f32.mxu0 0.0
        %642 = vmatmul.mubr.f32.gmra.mrb[0].mxu0 %v482
        %v643 = vpop.f32.mrb[0].mxu0
        %v644 = vadd.f32 %v323, %v643
        %v645 = vpop.f32.mrb[0].mxu0
        %646 = vmatprep.mubr.f32.mxu0 0.0
        %647 = vmatmul.mubr.f32.gmra.mrb[0].mxu0 %v485
        %v648 = vpop.f32.mrb[0].mxu0
        %v649 = vadd.f32 %v328, %v648
        %v650 = vpop.f32.mrb[0].mxu0
        %651 = vmatprep.mubr.f32.mxu0 0.0
        %652 = vmatmul.mubr.f32.gmra.mrb[0].mxu0 %v488
        %v653 = vpop.f32.mrb[0].mxu0
        %v654 = vadd.f32 %v333, %v653
        %v655 = vpop.f32.mrb[0].mxu0
        %656 = vmatprep.mubr.f32.mxu0 0.0
        %657 = vmatmul.mubr.f32.gmra.mrb[0].mxu0 %v491
        %v658 = vpop.f32.mrb[0].mxu0
        %v659 = vadd.f32 %v338, %v658
        %v660 = vpop.f32.mrb[0].mxu0
        %661 = vmatprep.mubr.f32.mxu0 0.0
        %662 = vmatmul.mubr.f32.gmra.mrb[0].mxu0 %v494
        %v663 = vpop.f32.mrb[0].mxu0
        %v664 = vadd.f32 %v343, %v663
        %v665 = vpop.f32.mrb[0].mxu0
        %666 = vmatprep.mubr.f32.mxu0 0.0
        %667 = vmatmul.mubr.f32.gmra.mrb[0].mxu0 %v497
        %v668 = vpop.f32.mrb[0].mxu0
        %v669 = vadd.f32 %v348, %v668
        %v670 = vpop.f32.mrb[0].mxu0
        %671 = vmatprep.mubr.f32.mxu0 0.0
        %672 = vmatmul.mubr.f32.gmra.mrb[0].mxu0 %v500
        %v673 = vpop.f32.mrb[0].mxu0
        %v674 = vadd.f32 %v353, %v673
        %v675 = vpop.f32.mrb[0].mxu0
        %676 = vmatprep.mubr.f32.mxu0 0.0
        %677 = vmatmul.mubr.f32.gmra.mrb[0].mxu0 %v503
        %v678 = vpop.f32.mrb[0].mxu0
        %v679 = vadd.f32 %v358, %v678
        %v680 = vpop.f32.mrb[0].mxu0
        %681 = vmatprep.mubr.f32.mxu0 0.0
        %682 = vmatmul.mubr.f32.gmra.mrb[0].mxu0 %v506
        %v683 = vpop.f32.mrb[0].mxu0
        %v684 = vadd.f32 %v363, %v683
        %v685 = vpop.f32.mrb[0].mxu0
        %686 = vmatprep.mubr.f32.mxu0 0.0
        %687 = vmatmul.mubr.f32.gmra.mrb[0].mxu0 %v509
        %v688 = vpop.f32.mrb[0].mxu0
        %v689 = vadd.f32 %v368, %v688
        %v690 = vpop.f32.mrb[0].mxu0
        %691 = vmatprep.mubr.f32.mxu0 0.0
        %692 = vmatmul.mubr.f32.gmra.mrb[0].mxu0 %v512
        %v693 = vpop.f32.mrb[0].mxu0
        %v694 = vadd.f32 %v373, %v693
        %v695 = vpop.f32.mrb[0].mxu0
        %696 = vmatprep.mubr.f32.mxu0 0.0
        %697 = vmatmul.mubr.f32.gmra.mrb[0].mxu0 %v515
        %v698 = vpop.f32.mrb[0].mxu0
        %v699 = vadd.f32 %v378, %v698
        %v700 = vpop.f32.mrb[0].mxu0
        %701 = vmatprep.mubr.f32.mxu0 0.0
        %702 = vmatmul.mubr.f32.gmra.mrb[0].mxu0 %v518
        %v703 = vpop.f32.mrb[0].mxu0
        %v704 = vadd.f32 %v383, %v703
        %v705 = vpop.f32.mrb[0].mxu0
        %706 = vmatprep.mubr.f32.mxu0 0.0
        %707 = vmatmul.mubr.f32.gmra.mrb[0].mxu0 %v521
        %v708 = vpop.f32.mrb[0].mxu0
        %v709 = vadd.f32 %v388, %v708
        %v710 = vpop.f32.mrb[0].mxu0
        %711 = vmatprep.mubr.f32.mxu0 0.0
        %712 = vmatmul.mubr.f32.gmra.mrb[0].mxu0 %v524
        %v713 = vpop.f32.mrb[0].mxu0
        %v714 = vadd.f32 %v393, %v713
        %v715 = vpop.f32.mrb[0].mxu0
        %716 = vmatprep.mubr.f32.mxu0 0.0
        %717 = vmatmul.mubr.f32.gmra.mrb[0].mxu0 %v527
        %v718 = vpop.f32.mrb[0].mxu0
        %v719 = vadd.f32 %v398, %v718
        %v720 = vpop.f32.mrb[0].mxu0
        %721 = vmatprep.mubr.f32.mxu0 0.0
        %722 = vmatmul.mubr.f32.gmra.mrb[0].mxu0 %v530
        %v723 = vpop.f32.mrb[0].mxu0
        %v724 = vadd.f32 %v403, %v723
        %v725 = vpop.f32.mrb[0].mxu0
        %726 = vmatprep.mubr.f32.mxu0 0.0
        %727 = vmatmul.mubr.f32.gmra.mrb[0].mxu0 %v533
        %v728 = vpop.f32.mrb[0].mxu0
        %v729 = vadd.f32 %v408, %v728
        %v730 = vpop.f32.mrb[0].mxu0
        %731 = vmatprep.mubr.f32.mxu0 0.0
        %732 = vmatmul.mubr.f32.gmra.mrb[0].mxu0 %v536
        %v733 = vpop.f32.mrb[0].mxu0
        %v734 = vadd.f32 %v413, %v733
        %v735 = vpop.f32.mrb[0].mxu0
        %736 = vmatprep.mubr.f32.mxu0 0.0
        %737 = vmatmul.mubr.f32.gmra.mrb[0].mxu0 %v539
        %v738 = vpop.f32.mrb[0].mxu0
        %v739 = vadd.f32 %v418, %v738
        %v740 = vpop.f32.mrb[0].mxu0
        %741 = vmatprep.mubr.f32.mxu0 0.0
        %742 = vmatmul.mubr.f32.gmra.mrb[0].mxu0 %v542
        %v743 = vpop.f32.mrb[0].mxu0
        %v744 = vadd.f32 %v423, %v743
        %v745 = vpop.f32.mrb[0].mxu0
        %746 = vmatprep.mubr.f32.mxu0 0.0
        %747 = vmatmul.mubr.f32.gmra.mrb[0].mxu0 %v545
        %v748 = vpop.f32.mrb[0].mxu0
        %v749 = vadd.f32 %v428, %v748
        %v750 = vpop.f32.mrb[0].mxu0
        %751 = vmatprep.mubr.f32.mxu0 0.0
        %752 = vmatmul.mubr.f32.gmra.mrb[0].mxu0 %v548
        %v753 = vpop.f32.mrb[0].mxu0
        %v754 = vadd.f32 %v433, %v753
        %v755 = vpop.f32.mrb[0].mxu0
        %756 = vmatprep.mubr.f32.mxu0 0.0
        %757 = vmatmul.mubr.f32.gmra.mrb[0].mxu0 %v551
        %v758 = vpop.f32.mrb[0].mxu0
        %v759 = vadd.f32 %v438, %v758
        %v760 = vpop.f32.mrb[0].mxu0
        %761 = vmatprep.mubr.f32.mxu0 0.0
        %762 = vmatmul.mubr.f32.gmra.mrb[0].mxu0 %v554
        %v763 = vpop.f32.mrb[0].mxu0
        %v764 = vadd.f32 %v443, %v763
        %v765 = vpop.f32.mrb[0].mxu0
        %766 = vmatprep.mubr.f32.mxu0 0.0
        %767 = vmatmul.mubr.f32.gmra.mrb[0].mxu0 %v557
        %v768 = vpop.f32.mrb[0].mxu0
        %v769 = vadd.f32 %v448, %v768
        %v770 = vpop.f32.mrb[0].mxu0
        %771 = vmatprep.mubr.f32.mxu0 0.0
        %772 = vmatmul.mubr.f32.gmra.mrb[0].mxu0 %v560
        %v773 = vpop.f32.mrb[0].mxu0
        %v774 = vadd.f32 %v453, %v773
        %v775 = vpop.f32.mrb[0].mxu0
        %776 = vmatprep.mubr.f32.mxu0 0.0
        %777 = vmatmul.mubr.f32.gmra.mrb[0].mxu0 %v563
        %v778 = vpop.f32.mrb[0].mxu0
        %v779 = vadd.f32 %v458, %v778
        %v780 = vpop.f32.mrb[0].mxu0
        %781 = vmatprep.mubr.f32.mxu0 0.0
        %782 = vmatmul.mubr.f32.gmra.mrb[0].mxu0 %v566
        %v783 = vpop.f32.mrb[0].mxu0
        %v784 = vadd.f32 %v463, %v783
        %v785 = vpop.f32.mrb[0].mxu0
        %786 = vmatprep.mubr.f32.mxu0 0.0
        %787 = vmatmul.mubr.f32.gmra.mrb[0].mxu0 %v569
        %v788 = vpop.f32.mrb[0].mxu0
        %v789 = vadd.f32 %v468, %v788
        %v790 = vpop.f32.mrb[0].mxu0
        %791 = vmatprep.mubr.f32.mxu0 0.0
        %792 = vmatmul.mubr.f32.gmra.mrb[0].mxu0 %v572
        %v793 = vpop.f32.mrb[0].mxu0
        %v794 = vadd.f32 %v473, %v793
        %v795 = vpop.f32.mrb[0].mxu0
        %796 = vmatprep.mubr.f32.mxu0 0.0
        %797 = vmatmul.mubr.f32.gmra.mrb[0].mxu0 %v575
        %v798 = vpop.f32.mrb[0].mxu0
        %v799 = vadd.f32 %v478, %v798
        %v800 = vpop.f32.mrb[0].mxu0
        %801 = vdwg.mxu0
        %v802 = vmax.f32 %v644, 0.0
        %v803 = vmax.f32 %v649, 0.0
        %v804 = vmax.f32 %v654, 0.0
        %v805 = vmax.f32 %v659, 0.0
        %v806 = vmax.f32 %v664, 0.0
        %v807 = vmax.f32 %v669, 0.0
        %v808 = vmax.f32 %v674, 0.0
        %v809 = vmax.f32 %v679, 0.0
        %v810 = vmax.f32 %v684, 0.0
        %v811 = vmax.f32 %v689, 0.0
        %v812 = vmax.f32 %v694, 0.0
        %v813 = vmax.f32 %v699, 0.0
        %v814 = vmax.f32 %v704, 0.0
        %v815 = vmax.f32 %v709, 0.0
        %v816 = vmax.f32 %v714, 0.0
        %v817 = vmax.f32 %v719, 0.0
        %v818 = vmax.f32 %v724, 0.0
        %v819 = vmax.f32 %v729, 0.0
        %v820 = vmax.f32 %v734, 0.0
        %v821 = vmax.f32 %v739, 0.0
        %v822 = vmax.f32 %v744, 0.0
        %v823 = vmax.f32 %v749, 0.0
        %v824 = vmax.f32 %v754, 0.0
        %v825 = vmax.f32 %v759, 0.0
        %v826 = vmax.f32 %v764, 0.0
        %v827 = vmax.f32 %v769, 0.0
        %v828 = vmax.f32 %v774, 0.0
        %v829 = vmax.f32 %v779, 0.0
        %v830 = vmax.f32 %v784, 0.0
        %v831 = vmax.f32 %v789, 0.0
        %v832 = vmax.f32 %v794, 0.0
        %v833 = vmax.f32 %v799, 0.0
        %v834 = vld [vmem:[%s2] sm:$0xff]
        %v835 = vld [vmem:[%s2 + $0x8] sm:$0xff]
        %v836 = vld [vmem:[%s2 + $0x10] sm:$0xff]
        %v837 = vld [vmem:[%s2 + $0x18] sm:$0xff]
        %v838 = vld [vmem:[%s2 + $0x20] sm:$0xff]
        %v839 = vld [vmem:[%s2 + $0x28] sm:$0xff]
        %v840 = vld [vmem:[%s2 + $0x30] sm:$0xff]
        %v841 = vld [vmem:[%s2 + $0x38] sm:$0xff]
        %v842 = vld [vmem:[%s2 + $0x40] sm:$0xff]
        %v843 = vld [vmem:[%s2 + $0x48] sm:$0xff]
        %v844 = vld [vmem:[%s2 + $0x50] sm:$0xff]
        %v845 = vld [vmem:[%s2 + $0x58] sm:$0xff]
        %v846 = vld [vmem:[%s2 + $0x60] sm:$0xff]
        %v847 = vld [vmem:[%s2 + $0x68] sm:$0xff]
        %v848 = vld [vmem:[%s2 + $0x70] sm:$0xff]
        %v849 = vld [vmem:[%s2 + $0x78] sm:$0xff]
        %v850 = vld [vmem:[%s2 + $0x80] sm:$0xff]
        %v851 = vld [vmem:[%s2 + $0x88] sm:$0xff]
        %v852 = vld [vmem:[%s2 + $0x90] sm:$0xff]
        %v853 = vld [vmem:[%s2 + $0x98] sm:$0xff]
        %v854 = vld [vmem:[%s2 + $0xa0] sm:$0xff]
        %v855 = vld [vmem:[%s2 + $0xa8] sm:$0xff]
        %v856 = vld [vmem:[%s2 + $0xb0] sm:$0xff]
        %v857 = vld [vmem:[%s2 + $0xb8] sm:$0xff]
        %v858 = vld [vmem:[%s2 + $0xc0] sm:$0xff]
        %v859 = vld [vmem:[%s2 + $0xc8] sm:$0xff]
        %v860 = vld [vmem:[%s2 + $0xd0] sm:$0xff]
        %v861 = vld [vmem:[%s2 + $0xd8] sm:$0xff]
        %v862 = vld [vmem:[%s2 + $0xe0] sm:$0xff]
        %v863 = vld [vmem:[%s2 + $0xe8] sm:$0xff]
        %v864 = vld [vmem:[%s2 + $0xf0] sm:$0xff]
        %v865 = vld [vmem:[%s2 + $0xf8] sm:$0xff]
        %v866 = vld [vmem:[%s2 + $0x100] sm:$0xff]
        %v867 = vld [vmem:[%s2 + $0x108] sm:$0xff]
        %v868 = vld [vmem:[%s2 + $0x110] sm:$0xff]
        %v869 = vld [vmem:[%s2 + $0x118] sm:$0xff]
        %v870 = vld [vmem:[%s2 + $0x120] sm:$0xff]
        %v871 = vld [vmem:[%s2 + $0x128] sm:$0xff]
        %v872 = vld [vmem:[%s2 + $0x130] sm:$0xff]
        %v873 = vld [vmem:[%s2 + $0x138] sm:$0xff]
        %v874 = vld [vmem:[%s2 + $0x140] sm:$0xff]
        %v875 = vld [vmem:[%s2 + $0x148] sm:$0xff]
        %v876 = vld [vmem:[%s2 + $0x150] sm:$0xff]
        %v877 = vld [vmem:[%s2 + $0x158] sm:$0xff]
        %v878 = vld [vmem:[%s2 + $0x160] sm:$0xff]
        %v879 = vld [vmem:[%s2 + $0x168] sm:$0xff]
        %v880 = vld [vmem:[%s2 + $0x170] sm:$0xff]
        %v881 = vld [vmem:[%s2 + $0x178] sm:$0xff]
        %v882 = vld [vmem:[%s2 + $0x180] sm:$0xff]
        %v883 = vld [vmem:[%s2 + $0x188] sm:$0xff]
        %v884 = vld [vmem:[%s2 + $0x190] sm:$0xff]
        %v885 = vld [vmem:[%s2 + $0x198] sm:$0xff]
        %v886 = vld [vmem:[%s2 + $0x1a0] sm:$0xff]
        %v887 = vld [vmem:[%s2 + $0x1a8] sm:$0xff]
        %v888 = vld [vmem:[%s2 + $0x1b0] sm:$0xff]
        %v889 = vld [vmem:[%s2 + $0x1b8] sm:$0xff]
        %v890 = vld [vmem:[%s2 + $0x1c0] sm:$0xff]
        %v891 = vld [vmem:[%s2 + $0x1c8] sm:$0xff]
        %v892 = vld [vmem:[%s2 + $0x1d0] sm:$0xff]
        %v893 = vld [vmem:[%s2 + $0x1d8] sm:$0xff]
        %v894 = vld [vmem:[%s2 + $0x1e0] sm:$0xff]
        %v895 = vld [vmem:[%s2 + $0x1e8] sm:$0xff]
        %v896 = vld [vmem:[%s2 + $0x1f0] sm:$0xff]
        %v897 = vld [vmem:[%s2 + $0x1f8] sm:$0xff]
        %898 = vset.pattern.permute.xlu0 1
        %899 = vperm.xlu0 %898, %v256
        %v900 = vpop.permute.xlu0 %899
        %902 = vset.pattern.permute.xlu0 1
        %903 = vperm.xlu0 %902, %v257
        %v904 = vpop.permute.xlu0 %903
        %906 = vset.pattern.permute.xlu0 1
        %907 = vperm.xlu0 %906, %v258
        %v908 = vpop.permute.xlu0 %907
        %910 = vset.pattern.permute.xlu0 1
        %911 = vperm.xlu0 %910, %v259
        %v912 = vpop.permute.xlu0 %911
        %914 = vset.pattern.permute.xlu0 1
        %915 = vperm.xlu0 %914, %v260
        %v916 = vpop.permute.xlu0 %915
        %918 = vset.pattern.permute.xlu0 1
        %919 = vperm.xlu0 %918, %v261
        %v920 = vpop.permute.xlu0 %919
        %922 = vset.pattern.permute.xlu0 1
        %923 = vperm.xlu0 %922, %v262
        %v924 = vpop.permute.xlu0 %923
        %926 = vset.pattern.permute.xlu0 1
        %927 = vperm.xlu0 %926, %v263
        %v928 = vpop.permute.xlu0 %927
        %930 = vset.pattern.permute.xlu0 1
        %931 = vperm.xlu0 %930, %v264
        %v932 = vpop.permute.xlu0 %931
        %934 = vset.pattern.permute.xlu0 1
        %935 = vperm.xlu0 %934, %v265
        %v936 = vpop.permute.xlu0 %935
        %938 = vset.pattern.permute.xlu0 1
        %939 = vperm.xlu0 %938, %v266
        %v940 = vpop.permute.xlu0 %939
        %942 = vset.pattern.permute.xlu0 1
        %943 = vperm.xlu0 %942, %v267
        %v944 = vpop.permute.xlu0 %943
        %946 = vset.pattern.permute.xlu0 1
        %947 = vperm.xlu0 %946, %v268
        %v948 = vpop.permute.xlu0 %947
        %950 = vset.pattern.permute.xlu0 1
        %951 = vperm.xlu0 %950, %v269
        %v952 = vpop.permute.xlu0 %951
        %954 = vset.pattern.permute.xlu0 1
        %955 = vperm.xlu0 %954, %v270
        %v956 = vpop.permute.xlu0 %955
        %958 = vset.pattern.permute.xlu0 1
        %959 = vperm.xlu0 %958, %v271
        %v960 = vpop.permute.xlu0 %959
        %962 = vset.pattern.permute.xlu0 1
        %963 = vperm.xlu0 %962, %v272
        %v964 = vpop.permute.xlu0 %963
        %966 = vset.pattern.permute.xlu0 1
        %967 = vperm.xlu0 %966, %v273
        %v968 = vpop.permute.xlu0 %967
        %970 = vset.pattern.permute.xlu0 1
        %971 = vperm.xlu0 %970, %v274
        %v972 = vpop.permute.xlu0 %971
        %974 = vset.pattern.permute.xlu0 1
        %975 = vperm.xlu0 %974, %v275
        %v976 = vpop.permute.xlu0 %975
        %978 = vset.pattern.permute.xlu0 1
        %979 = vperm.xlu0 %978, %v276
        %v980 = vpop.permute.xlu0 %979
        %982 = vset.pattern.permute.xlu0 1
        %983 = vperm.xlu0 %982, %v277
        %v984 = vpop.permute.xlu0 %983
        %986 = vset.pattern.permute.xlu0 1
        %987 = vperm.xlu0 %986, %v278
        %v988 = vpop.permute.xlu0 %987
        %990 = vset.pattern.permute.xlu0 1
        %991 = vperm.xlu0 %990, %v279
        %v992 = vpop.permute.xlu0 %991
        %994 = vset.pattern.permute.xlu0 1
        %995 = vperm.xlu0 %994, %v280
        %v996 = vpop.permute.xlu0 %995
        %998 = vset.pattern.permute.xlu0 1
        %999 = vperm.xlu0 %998, %v281
        %v1000 = vpop.permute.xlu0 %999
        %1002 = vset.pattern.permute.xlu0 1
        %1003 = vperm.xlu0 %1002, %v282
        %v1004 = vpop.permute.xlu0 %1003
        %1006 = vset.pattern.permute.xlu0 1
        %1007 = vperm.xlu0 %1006, %v283
        %v1008 = vpop.permute.xlu0 %1007
        %1010 = vset.pattern.permute.xlu0 1
        %1011 = vperm.xlu0 %1010, %v284
        %v1012 = vpop.permute.xlu0 %1011
        %1014 = vset.pattern.permute.xlu0 1
        %1015 = vperm.xlu0 %1014, %v285
        %v1016 = vpop.permute.xlu0 %1015
        %1018 = vset.pattern.permute.xlu0 1
        %1019 = vperm.xlu0 %1018, %v286
        %v1020 = vpop.permute.xlu0 %1019
        %1022 = vset.pattern.permute.xlu0 1
        %1023 = vperm.xlu0 %1022, %v287
        %v1024 = vpop.permute.xlu0 %1023
        %1026 = vmatprep.subr.mxu0 0.0
        %1027 = vmatpush1.msra.mxu0 %v802
        %1028 = vmatprep.subr.mxu0 0.0
        %1029 = vmatpush1.msra.mxu0 %v803
        %1030 = vmatprep.subr.mxu0 0.0
        %1031 = vmatpush1.msra.mxu0 %v804
        %1032 = vmatprep.subr.mxu0 0.0
        %1033 = vmatpush1.msra.mxu0 %v805
        %1034 = vmatprep.subr.mxu0 0.0
        %1035 = vmatpush1.msra.mxu0 %v806
        %1036 = vmatprep.subr.mxu0 0.0
        %1037 = vmatpush1.msra.mxu0 %v807
        %1038 = vmatprep.subr.mxu0 0.0
        %1039 = vmatpush1.msra.mxu0 %v808
        %1040 = vmatprep.subr.mxu0 0.0
        %1041 = vmatpush1.msra.mxu0 %v809
        %1042 = vmatprep.subr.mxu0 0.0
        %1043 = vmatpush1.msra.mxu0 %v810
        %1044 = vmatprep.subr.mxu0 0.0
        %1045 = vmatpush1.msra.mxu0 %v811
        %1046 = vmatprep.subr.mxu0 0.0
        %1047 = vmatpush1.msra.mxu0 %v812
        %1048 = vmatprep.subr.mxu0 0.0
        %1049 = vmatpush1.msra.mxu0 %v813
        %1050 = vmatprep.subr.mxu0 0.0
        %1051 = vmatpush1.msra.mxu0 %v814
        %1052 = vmatprep.subr.mxu0 0.0
        %1053 = vmatpush1.msra.mxu0 %v815
        %1054 = vmatprep.subr.mxu0 0.0
        %1055 = vmatpush1.msra.mxu0 %v816
        %1056 = vmatprep.subr.mxu0 0.0
        %1057 = vmatpush1.msra.mxu0 %v817
        %1058 = vmatprep.subr.mxu0 0.0
        %1059 = vmatpush1.msra.mxu0 %v818
        %1060 = vmatprep.subr.mxu0 0.0
        %1061 = vmatpush1.msra.mxu0 %v819
        %1062 = vmatprep.subr.mxu0 0.0
        %1063 = vmatpush1.msra.mxu0 %v820
        %1064 = vmatprep.subr.mxu0 0.0
        %1065 = vmatpush1.msra.mxu0 %v821
        %1066 = vmatprep.subr.mxu0 0.0
        %1067 = vmatpush1.msra.mxu0 %v822
        %1068 = vmatprep.subr.mxu0 0.0
        %1069 = vmatpush1.msra.mxu0 %v823
        %1070 = vmatprep.subr.mxu0 0.0
        %1071 = vmatpush1.msra.mxu0 %v824
        %1072 = vmatprep.subr.mxu0 0.0
        %1073 = vmatpush1.msra.mxu0 %v825
        %1074 = vmatprep.subr.mxu0 0.0
        %1075 = vmatpush1.msra.mxu0 %v826
        %1076 = vmatprep.subr.mxu0 0.0
        %1077 = vmatpush1.msra.mxu0 %v827
        %1078 = vmatprep.subr.mxu0 0.0
        %1079 = vmatpush1.msra.mxu0 %v828
        %1080 = vmatprep.subr.mxu0 0.0
        %1081 = vmatpush1.msra.mxu0 %v829
        %1082 = vmatprep.subr.mxu0 0.0
        %1083 = vmatpush1.msra.mxu0 %v830
        %1084 = vmatprep.subr.mxu0 0.0
        %1085 = vmatpush1.msra.mxu0 %v831
        %1086 = vmatprep.subr.mxu0 0.0
        %1087 = vmatpush1.msra.mxu0 %v832
        %1088 = vmatprep.subr.mxu0 0.0
        %1089 = vmatpush1.msra.mxu0 %v833
        %1090 = vmatprep.mubr.f32.mxu0 %v835
        %1091 = vmatmul.mubr.f32.gmra.mrb[0].mxu0 %v834
        %v1092 = vpop.f32.mrb[0].mxu0
        %v1093 = vadd.f32 %v900, %v1092
        %v1094 = vpop.f32.mrb[0].mxu0
        %1095 = vmatprep.mubr.f32.mxu0 %v837
        %1096 = vmatmul.mubr.f32.gmra.mrb[0].mxu0 %v836
        %v1097 = vpop.f32.mrb[0].mxu0
        %v1098 = vadd.f32 %v904, %v1097
        %v1099 = vpop.f32.mrb[0].mxu0
        %1100 = vmatprep.mubr.f32.mxu0 %v839
        %1101 = vmatmul.mubr.f32.gmra.mrb[0].mxu0 %v838
        %v1102 = vpop.f32.mrb[0].mxu0
        %v1103 = vadd.f32 %v908, %v1102
        %v1104 = vpop.f32.mrb[0].mxu0
        %1105 = vmatprep.mubr.f32.mxu0 %v841
        %1106 = vmatmul.mubr.f32.gmra.mrb[0].mxu0 %v840
        %v1107 = vpop.f32.mrb[0].mxu0
        %v1108 = vadd.f32 %v912, %v1107
        %v1109 = vpop.f32.mrb[0].mxu0
        %1110 = vmatprep.mubr.f32.mxu0 %v843
        %1111 = vmatmul.mubr.f32.gmra.mrb[0].mxu0 %v842
        %v1112 = vpop.f32.mrb[0].mxu0
        %v1113 = vadd.f32 %v916, %v1112
        %v1114 = vpop.f32.mrb[0].mxu0
        %1115 = vmatprep.mubr.f32.mxu0 %v845
        %1116 = vmatmul.mubr.f32.gmra.mrb[0].mxu0 %v844
        %v1117 = vpop.f32.mrb[0].mxu0
        %v1118 = vadd.f32 %v920, %v1117
        %v1119 = vpop.f32.mrb[0].mxu0
        %1120 = vmatprep.mubr.f32.mxu0 %v847
        %1121 = vmatmul.mubr.f32.gmra.mrb[0].mxu0 %v846
        %v1122 = vpop.f32.mrb[0].mxu0
        %v1123 = vadd.f32 %v924, %v1122
        %v1124 = vpop.f32.mrb[0].mxu0
        %1125 = vmatprep.mubr.f32.mxu0 %v849
        %1126 = vmatmul.mubr.f32.gmra.mrb[0].mxu0 %v848
        %v1127 = vpop.f32.mrb[0].mxu0
        %v1128 = vadd.f32 %v928, %v1127
        %v1129 = vpop.f32.mrb[0].mxu0
        %1130 = vmatprep.mubr.f32.mxu0 %v851
        %1131 = vmatmul.mubr.f32.gmra.mrb[0].mxu0 %v850
        %v1132 = vpop.f32.mrb[0].mxu0
        %v1133 = vadd.f32 %v932, %v1132
        %v1134 = vpop.f32.mrb[0].mxu0
        %1135 = vmatprep.mubr.f32.mxu0 %v853
        %1136 = vmatmul.mubr.f32.gmra.mrb[0].mxu0 %v852
        %v1137 = vpop.f32.mrb[0].mxu0
        %v1138 = vadd.f32 %v936, %v1137
        %v1139 = vpop.f32.mrb[0].mxu0
        %1140 = vmatprep.mubr.f32.mxu0 %v855
        %1141 = vmatmul.mubr.f32.gmra.mrb[0].mxu0 %v854
        %v1142 = vpop.f32.mrb[0].mxu0
        %v1143 = vadd.f32 %v940, %v1142
        %v1144 = vpop.f32.mrb[0].mxu0
        %1145 = vmatprep.mubr.f32.mxu0 %v857
        %1146 = vmatmul.mubr.f32.gmra.mrb[0].mxu0 %v856
        %v1147 = vpop.f32.mrb[0].mxu0
        %v1148 = vadd.f32 %v944, %v1147
        %v1149 = vpop.f32.mrb[0].mxu0
        %1150 = vmatprep.mubr.f32.mxu0 %v859
        %1151 = vmatmul.mubr.f32.gmra.mrb[0].mxu0 %v858
        %v1152 = vpop.f32.mrb[0].mxu0
        %v1153 = vadd.f32 %v948, %v1152
        %v1154 = vpop.f32.mrb[0].mxu0
        %1155 = vmatprep.mubr.f32.mxu0 %v861
        %1156 = vmatmul.mubr.f32.gmra.mrb[0].mxu0 %v860
        %v1157 = vpop.f32.mrb[0].mxu0
        %v1158 = vadd.f32 %v952, %v1157
        %v1159 = vpop.f32.mrb[0].mxu0
        %1160 = vmatprep.mubr.f32.mxu0 %v863
        %1161 = vmatmul.mubr.f32.gmra.mrb[0].mxu0 %v862
        %v1162 = vpop.f32.mrb[0].mxu0
        %v1163 = vadd.f32 %v956, %v1162
        %v1164 = vpop.f32.mrb[0].mxu0
        %1165 = vmatprep.mubr.f32.mxu0 %v865
        %1166 = vmatmul.mubr.f32.gmra.mrb[0].mxu0 %v864
        %v1167 = vpop.f32.mrb[0].mxu0
        %v1168 = vadd.f32 %v960, %v1167
        %v1169 = vpop.f32.mrb[0].mxu0
        %1170 = vmatprep.mubr.f32.mxu0 %v867
        %1171 = vmatmul.mubr.f32.gmra.mrb[0].mxu0 %v866
        %v1172 = vpop.f32.mrb[0].mxu0
        %v1173 = vadd.f32 %v964, %v1172
        %v1174 = vpop.f32.mrb[0].mxu0
        %1175 = vmatprep.mubr.f32.mxu0 %v869
        %1176 = vmatmul.mubr.f32.gmra.mrb[0].mxu0 %v868
        %v1177 = vpop.f32.mrb[0].mxu0
        %v1178 = vadd.f32 %v968, %v1177
        %v1179 = vpop.f32.mrb[0].mxu0
        %1180 = vmatprep.mubr.f32.mxu0 %v871
        %1181 = vmatmul.mubr.f32.gmra.mrb[0].mxu0 %v870
        %v1182 = vpop.f32.mrb[0].mxu0
        %v1183 = vadd.f32 %v972, %v1182
        %v1184 = vpop.f32.mrb[0].mxu0
        %1185 = vmatprep.mubr.f32.mxu0 %v873
        %1186 = vmatmul.mubr.f32.gmra.mrb[0].mxu0 %v872
        %v1187 = vpop.f32.mrb[0].mxu0
        %v1188 = vadd.f32 %v976, %v1187
        %v1189 = vpop.f32.mrb[0].mxu0
        %1190 = vmatprep.mubr.f32.mxu0 %v875
        %1191 = vmatmul.mubr.f32.gmra.mrb[0].mxu0 %v874
        %v1192 = vpop.f32.mrb[0].mxu0
        %v1193 = vadd.f32 %v980, %v1192
        %v1194 = vpop.f32.mrb[0].mxu0
        %1195 = vmatprep.mubr.f32.mxu0 %v877
        %1196 = vmatmul.mubr.f32.gmra.mrb[0].mxu0 %v876
        %v1197 = vpop.f32.mrb[0].mxu0
        %v1198 = vadd.f32 %v984, %v1197
        %v1199 = vpop.f32.mrb[0].mxu0
        %1200 = vmatprep.mubr.f32.mxu0 %v879
        %1201 = vmatmul.mubr.f32.gmra.mrb[0].mxu0 %v878
        %v1202 = vpop.f32.mrb[0].mxu0
        %v1203 = vadd.f32 %v988, %v1202
        %v1204 = vpop.f32.mrb[0].mxu0
        %1205 = vmatprep.mubr.f32.mxu0 %v881
        %1206 = vmatmul.mubr.f32.gmra.mrb[0].mxu0 %v880
        %v1207 = vpop.f32.mrb[0].mxu0
        %v1208 = vadd.f32 %v992, %v1207
        %v1209 = vpop.f32.mrb[0].mxu0
        %1210 = vmatprep.mubr.f32.mxu0 %v883
        %1211 = vmatmul.mubr.f32.gmra.mrb[0].mxu0 %v882
        %v1212 = vpop.f32.mrb[0].mxu0
        %v1213 = vadd.f32 %v996, %v1212
        %v1214 = vpop.f32.mrb[0].mxu0
        %1215 = vmatprep.mubr.f32.mxu0 %v885
        %1216 = vmatmul.mubr.f32.gmra.mrb[0].mxu0 %v884
        %v1217 = vpop.f32.mrb[0].mxu0
        %v1218 = vadd.f32 %v1000, %v1217
        %v1219 = vpop.f32.mrb[0].mxu0
        %1220 = vmatprep.mubr.f32.mxu0 %v887
        %1221 = vmatmul.mubr.f32.gmra.mrb[0].mxu0 %v886
        %v1222 = vpop.f32.mrb[0].mxu0
        %v1223 = vadd.f32 %v1004, %v1222
        %v1224 = vpop.f32.mrb[0].mxu0
        %1225 = vmatprep.mubr.f32.mxu0 %v889
        %1226 = vmatmul.mubr.f32.gmra.mrb[0].mxu0 %v888
        %v1227 = vpop.f32.mrb[0].mxu0
        %v1228 = vadd.f32 %v1008, %v1227
        %v1229 = vpop.f32.mrb[0].mxu0
        %1230 = vmatprep.mubr.f32.mxu0 %v891
        %1231 = vmatmul.mubr.f32.gmra.mrb[0].mxu0 %v890
        %v1232 = vpop.f32.mrb[0].mxu0
        %v1233 = vadd.f32 %v1012, %v1232
        %v1234 = vpop.f32.mrb[0].mxu0
        %1235 = vmatprep.mubr.f32.mxu0 %v893
        %1236 = vmatmul.mubr.f32.gmra.mrb[0].mxu0 %v892
        %v1237 = vpop.f32.mrb[0].mxu0
        %v1238 = vadd.f32 %v1016, %v1237
        %v1239 = vpop.f32.mrb[0].mxu0
        %1240 = vmatprep.mubr.f32.mxu0 %v895
        %1241 = vmatmul.mubr.f32.gmra.mrb[0].mxu0 %v894
        %v1242 = vpop.f32.mrb[0].mxu0
        %v1243 = vadd.f32 %v1020, %v1242
        %v1244 = vpop.f32.mrb[0].mxu0
        %1245 = vmatprep.mubr.f32.mxu0 %v897
        %1246 = vmatmul.mubr.f32.gmra.mrb[0].mxu0 %v896
        %v1247 = vpop.f32.mrb[0].mxu0
        %v1248 = vadd.f32 %v1024, %v1247
        %v1249 = vpop.f32.mrb[0].mxu0
        %1250 = vdwg.mxu0
        %v1251 = vmax.f32 %v1093, 0.0
        %v1252 = vmax.f32 %v1098, 0.0
        %v1253 = vmax.f32 %v1103, 0.0
        %v1254 = vmax.f32 %v1108, 0.0
        %v1255 = vmax.f32 %v1113, 0.0
        %v1256 = vmax.f32 %v1118, 0.0
        %v1257 = vmax.f32 %v1123, 0.0
        %v1258 = vmax.f32 %v1128, 0.0
        %v1259 = vmax.f32 %v1133, 0.0
        %v1260 = vmax.f32 %v1138, 0.0
        %v1261 = vmax.f32 %v1143, 0.0
        %v1262 = vmax.f32 %v1148, 0.0
        %v1263 = vmax.f32 %v1153, 0.0
        %v1264 = vmax.f32 %v1158, 0.0
        %v1265 = vmax.f32 %v1163, 0.0
        %v1266 = vmax.f32 %v1168, 0.0
        %v1267 = vmax.f32 %v1173, 0.0
        %v1268 = vmax.f32 %v1178, 0.0
        %v1269 = vmax.f32 %v1183, 0.0
        %v1270 = vmax.f32 %v1188, 0.0
        %v1271 = vmax.f32 %v1193, 0.0
        %v1272 = vmax.f32 %v1198, 0.0
        %v1273 = vmax.f32 %v1203, 0.0
        %v1274 = vmax.f32 %v1208, 0.0
        %v1275 = vmax.f32 %v1213, 0.0
        %v1276 = vmax.f32 %v1218, 0.0
        %v1277 = vmax.f32 %v1223, 0.0
        %v1278 = vmax.f32 %v1228, 0.0
        %v1279 = vmax.f32 %v1233, 0.0
        %v1280 = vmax.f32 %v1238, 0.0
        %v1281 = vmax.f32 %v1243, 0.0
        %v1282 = vmax.f32 %v1248, 0.0
        %1283 = vset.pattern.permute.xlu0 2
        %1284 = vperm.xlu0 %1283, %v256
        %v1285 = vpop.permute.xlu0 %1284
        %1287 = vset.pattern.permute.xlu0 2
        %1288 = vperm.xlu0 %1287, %v257
        %v1289 = vpop.permute.xlu0 %1288
        %1291 = vset.pattern.permute.xlu0 2
        %1292 = vperm.xlu0 %1291, %v258
        %v1293 = vpop.permute.xlu0 %1292
        %1295 = vset.pattern.permute.xlu0 2
        %1296 = vperm.xlu0 %1295, %v259
        %v1297 = vpop.permute.xlu0 %1296
        %1299 = vset.pattern.permute.xlu0 2
        %1300 = vperm.xlu0 %1299, %v260
        %v1301 = vpop.permute.xlu0 %1300
        %1303 = vset.pattern.permute.xlu0 2
        %1304 = vperm.xlu0 %1303, %v261
        %v1305 = vpop.permute.xlu0 %1304
        %1307 = vset.pattern.permute.xlu0 2
        %1308 = vperm.xlu0 %1307, %v262
        %v1309 = vpop.permute.xlu0 %1308
        %1311 = vset.pattern.permute.xlu0 2
        %1312 = vperm.xlu0 %1311, %v263
        %v1313 = vpop.permute.xlu0 %1312
        %1315 = vset.pattern.permute.xlu0 2
        %1316 = vperm.xlu0 %1315, %v264
        %v1317 = vpop.permute.xlu0 %1316
        %1319 = vset.pattern.permute.xlu0 2
        %1320 = vperm.xlu0 %1319, %v265
        %v1321 = vpop.permute.xlu0 %1320
        %1323 = vset.pattern.permute.xlu0 2
        %1324 = vperm.xlu0 %1323, %v266
        %v1325 = vpop.permute.xlu0 %1324
        %1327 = vset.pattern.permute.xlu0 2
        %1328 = vperm.xlu0 %1327, %v267
        %v1329 = vpop.permute.xlu0 %1328
        %1331 = vset.pattern.permute.xlu0 2
        %1332 = vperm.xlu0 %1331, %v268
        %v1333 = vpop.permute.xlu0 %1332
        %1335 = vset.pattern.permute.xlu0 2
        %1336 = vperm.xlu0 %1335, %v269
        %v1337 = vpop.permute.xlu0 %1336
        %1339 = vset.pattern.permute.xlu0 2
        %1340 = vperm.xlu0 %1339, %v270
        %v1341 = vpop.permute.xlu0 %1340
        %1343 = vset.pattern.permute.xlu0 2
        %1344 = vperm.xlu0 %1343, %v271
        %v1345 = vpop.permute.xlu0 %1344
        %1347 = vset.pattern.permute.xlu0 2
        %1348 = vperm.xlu0 %1347, %v272
        %v1349 = vpop.permute.xlu0 %1348
        %1351 = vset.pattern.permute.xlu0 2
        %1352 = vperm.xlu0 %1351, %v273
        %v1353 = vpop.permute.xlu0 %1352
        %1355 = vset.pattern.permute.xlu0 2
        %1356 = vperm.xlu0 %1355, %v274
        %v1357 = vpop.permute.xlu0 %1356
        %1359 = vset.pattern.permute.xlu0 2
        %1360 = vperm.xlu0 %1359, %v275
        %v1361 = vpop.permute.xlu0 %1360
        %1363 = vset.pattern.permute.xlu0 2
        %1364 = vperm.xlu0 %1363, %v276
        %v1365 = vpop.permute.xlu0 %1364
        %1367 = vset.pattern.permute.xlu0 2
        %1368 = vperm.xlu0 %1367, %v277
        %v1369 = vpop.permute.xlu0 %1368
        %1371 = vset.pattern.permute.xlu0 2
        %1372 = vperm.xlu0 %1371, %v278
        %v1373 = vpop.permute.xlu0 %1372
        %1375 = vset.pattern.permute.xlu0 2
        %1376 = vperm.xlu0 %1375, %v279
        %v1377 = vpop.permute.xlu0 %1376
        %1379 = vset.pattern.permute.xlu0 2
        %1380 = vperm.xlu0 %1379, %v280
        %v1381 = vpop.permute.xlu0 %1380
        %1383 = vset.pattern.permute.xlu0 2
        %1384 = vperm.xlu0 %1383, %v281
        %v1385 = vpop.permute.xlu0 %1384
        %1387 = vset.pattern.permute.xlu0 2
        %1388 = vperm.xlu0 %1387, %v282
        %v1389 = vpop.permute.xlu0 %1388
        %1391 = vset.pattern.permute.xlu0 2
        %1392 = vperm.xlu0 %1391, %v283
        %v1393 = vpop.permute.xlu0 %1392
        %1395 = vset.pattern.permute.xlu0 2
        %1396 = vperm.xlu0 %1395, %v284
        %v1397 = vpop.permute.xlu0 %1396
        %1399 = vset.pattern.permute.xlu0 2
        %1400 = vperm.xlu0 %1399, %v285
        %v1401 = vpop.permute.xlu0 %1400
        %1403 = vset.pattern.permute.xlu0 2
        %1404 = vperm.xlu0 %1403, %v286
        %v1405 = vpop.permute.xlu0 %1404
        %1407 = vset.pattern.permute.xlu0 2
        %1408 = vperm.xlu0 %1407, %v287
        %v1409 = vpop.permute.xlu0 %1408
        %v1411 = vmul.f32 %v1251, %v1285
        %v1412 = vmul.f32 %v1252, %v1289
        %v1413 = vmul.f32 %v1253, %v1293
        %v1414 = vmul.f32 %v1254, %v1297
        %v1415 = vmul.f32 %v1255, %v1301
        %v1416 = vmul.f32 %v1256, %v1305
        %v1417 = vmul.f32 %v1257, %v1309
        %v1418 = vmul.f32 %v1258, %v1313
        %v1419 = vmul.f32 %v1259, %v1317
        %v1420 = vmul.f32 %v1260, %v1321
        %v1421 = vmul.f32 %v1261, %v1325
        %v1422 = vmul.f32 %v1262, %v1329
        %v1423 = vmul.f32 %v1263, %v1333
        %v1424 = vmul.f32 %v1264, %v1337
        %v1425 = vmul.f32 %v1265, %v1341
        %v1426 = vmul.f32 %v1266, %v1345
        %v1427 = vmul.f32 %v1267, %v1349
        %v1428 = vmul.f32 %v1268, %v1353
        %v1429 = vmul.f32 %v1269, %v1357
        %v1430 = vmul.f32 %v1270, %v1361
        %v1431 = vmul.f32 %v1271, %v1365
        %v1432 = vmul.f32 %v1272, %v1369
        %v1433 = vmul.f32 %v1273, %v1373
        %v1434 = vmul.f32 %v1274, %v1377
        %v1435 = vmul.f32 %v1275, %v1381
        %v1436 = vmul.f32 %v1276, %v1385
        %v1437 = vmul.f32 %v1277, %v1389
        %v1438 = vmul.f32 %v1278, %v1393
        %v1439 = vmul.f32 %v1279, %v1397
        %v1440 = vmul.f32 %v1280, %v1401
        %v1441 = vmul.f32 %v1281, %v1405
        %v1442 = vmul.f32 %v1282, %v1409
        %vm1443 = vcmask 130048
        %v1444 = vsel %vm1443, %v1411, 0.0
        %v1445 = vsel %vm1443, %v1412, 0.0
        %v1446 = vadd.f32 %v1444, %v1445
        %v1447 = vsel %vm1443, %v1413, 0.0
        %v1448 = vadd.f32 %v1446, %v1447
        %v1449 = vsel %vm1443, %v1414, 0.0
        %v1450 = vadd.f32 %v1448, %v1449
        %v1451 = vsel %vm1443, %v1415, 0.0
        %v1452 = vadd.f32 %v1450, %v1451
        %v1453 = vsel %vm1443, %v1416, 0.0
        %v1454 = vadd.f32 %v1452, %v1453
        %v1455 = vsel %vm1443, %v1417, 0.0
        %v1456 = vadd.f32 %v1454, %v1455
        %v1457 = vsel %vm1443, %v1418, 0.0
        %v1458 = vadd.f32 %v1456, %v1457
        %v1459 = vsel %vm1443, %v1419, 0.0
        %v1460 = vadd.f32 %v1458, %v1459
        %v1461 = vsel %vm1443, %v1420, 0.0
        %v1462 = vadd.f32 %v1460, %v1461
        %v1463 = vsel %vm1443, %v1421, 0.0
        %v1464 = vadd.f32 %v1462, %v1463
        %v1465 = vsel %vm1443, %v1422, 0.0
        %v1466 = vadd.f32 %v1464, %v1465
        %v1467 = vsel %vm1443, %v1423, 0.0
        %v1468 = vadd.f32 %v1466, %v1467
        %v1469 = vsel %vm1443, %v1424, 0.0
        %v1470 = vadd.f32 %v1468, %v1469
        %v1471 = vsel %vm1443, %v1425, 0.0
        %v1472 = vadd.f32 %v1470, %v1471
        %v1473 = vsel %vm1443, %v1426, 0.0
        %v1474 = vadd.f32 %v1472, %v1473
        %v1475 = vsel %vm1443, %v1427, 0.0
        %v1476 = vadd.f32 %v1474, %v1475
        %v1477 = vsel %vm1443, %v1428, 0.0
        %v1478 = vadd.f32 %v1476, %v1477
        %v1479 = vsel %vm1443, %v1429, 0.0
        %v1480 = vadd.f32 %v1478, %v1479
        %v1481 = vsel %vm1443, %v1430, 0.0
        %v1482 = vadd.f32 %v1480, %v1481
        %v1483 = vsel %vm1443, %v1431, 0.0
        %v1484 = vadd.f32 %v1482, %v1483
        %v1485 = vsel %vm1443, %v1432, 0.0
        %v1486 = vadd.f32 %v1484, %v1485
        %v1487 = vsel %vm1443, %v1433, 0.0
        %v1488 = vadd.f32 %v1486, %v1487
        %v1489 = vsel %vm1443, %v1434, 0.0
        %v1490 = vadd.f32 %v1488, %v1489
        %v1491 = vsel %vm1443, %v1435, 0.0
        %v1492 = vadd.f32 %v1490, %v1491
        %v1493 = vsel %vm1443, %v1436, 0.0
        %v1494 = vadd.f32 %v1492, %v1493
        %v1495 = vsel %vm1443, %v1437, 0.0
        %v1496 = vadd.f32 %v1494, %v1495
        %v1497 = vsel %vm1443, %v1438, 0.0
        %v1498 = vadd.f32 %v1496, %v1497
        %v1499 = vsel %vm1443, %v1439, 0.0
        %v1500 = vadd.f32 %v1498, %v1499
        %v1501 = vsel %vm1443, %v1440, 0.0
        %v1502 = vadd.f32 %v1500, %v1501
        %v1503 = vsel %vm1443, %v1441, 0.0
        %v1504 = vadd.f32 %v1502, %v1503
        %v1505 = vsel %vm1443, %v1442, 0.0
        %v1506 = vadd.f32 %v1504, %v1505
        %v1507 = vrot.slane %v1506, 4
        %v1508 = vadd.f32 %v1506, %v1507
        %v1509 = vrot.slane %v1508, 2
        %v1510 = vadd.f32 %v1508, %v1509
        %v1511 = vrot.slane %v1510, 1
        %v1512 = vadd.f32 %v1510, %v1511
        %s1513 = sld [smem:[#allocation2]]
        %v1514 = vstv %s1513
        %v1515 = vadd.f32 %v1512, %v1514
        %vm1516 = vcmask 122880
        %1517 = vst.msk [vmem:[%s239] sm:$0x1] %vm1516, %v1515
        %s1518 = sand.u32 %s154, 1
        %s1519 = scalar_lea.sflag [#allocation4], %s1518
        %s1520 = sand.u32 %s154, 1
        %s1521 = scalar_lea.vmem [#allocation3], %s1520
        // Predicated region
        $region41: #{tpu_custom_call.1} parent=39 // pred_check
          %p1522 = pneg %p164
        $region42: #{tpu_custom_call.1} parent=39 // pred_check_branch
          %1524 = sbr.rel (%p1522) target = $region44
        $region43: #{tpu_custom_call.1} parent=39 // pred_region
          %s1526 = ssub.s32 16, 16
          %1527 = vsyncadd %s1519, %s1526
          %s1528 = sadd.s32 %s25, %s24
          %s1529 = smul.addr %s1528, 16
          %s1530 = scalar_lea.hbm %s5, %s1529
          %s1532 = sshll.u32 %s1521, 4
          %s1533 = int_to_ptr.vmem [resolvable:$true] %s1532
          %1535 = dma.vmem_to_hbm [thread:$0]  %s1533, 16, %s1530, %s1519
        $region44: #{tpu_custom_call.1} parent=39 // pred_fallthru
          _
      $region40: #{tpu_custom_call.1} parent=5 // pred_fallthru
        _
      %p1536 = scmp.le.s32.totalorder 2, %s15
      // Predicated region
      $region45: #{tpu_custom_call.1} parent=5 // pred_check
        %p1537 = pneg %p1536
      $region46: #{tpu_custom_call.1} parent=5 // pred_check_branch
        %1539 = sbr.rel (%p1537) target = $region48
      $region47: #{tpu_custom_call.1} parent=5 // pred_region
        %s1540 = ssub.s32 %s15, 2
        // Predicated region
        $region49: #{tpu_custom_call.1} parent=47 // pred_check
          %p1541 = pneg %p170
        $region50: #{tpu_custom_call.1} parent=47 // pred_check_branch
          %1543 = sbr.rel (%p1541) target = $region52
        $region51: #{tpu_custom_call.1} parent=47 // pred_region
          %s1544 = sand.u32 %s155, 1
          %s1545 = scalar_lea.sflag [#allocation4], %s1544
          %s1546 = sand.u32 %s155, 1
          %s1547 = scalar_lea.vmem [#allocation3], %s1546
          %1548 = dma.done %s1545, 16
        $region52: #{tpu_custom_call.1} parent=47 // pred_fallthru
          _
      $region48: #{tpu_custom_call.1} parent=5 // pred_fallthru
        _
    $region6: #{tpu_custom_call.1} parent=1 // loop_footer
      %s19 = sadd.s32 1, %s15
    $region7: #{tpu_custom_call.1} parent=1 // loop_footer_branch
      %14 = sbr.rel target = $region3
    $region8: #{tpu_custom_call.1} parent=1 // loop_exit
      _
    %1549 = vsyncpa [#allocation4], 1
    %s1550 = scalar_lea.sflag [#allocation4], 1
    %1551 = vsyncpa %s1550, 1

// kernel: tpu_custom_call.1
$region0: #{tpu_custom_call.1}
  #allocation0 [shape = 'u32[]', space=smem, size = 0x4, offset = 0x4, fixed_abs, tag = 'smem constant byte address 0x4 - core index']
  #allocation1 [shape = 'u32[144,128]{1,0:T(1,128)}', space=vmem, size = 0x12000, scoped, tag = 'internal scratch']
  #allocation2 [shape = 'f32[1]{0:T(128)S(6)}', space=smem, size = 0x200, scoped, tag = 'scoped memory for tpu_custom_call.1']
  %s0 = inlined_call_operand.vmem [shape: f32[2,64,16], index: 0, kind: input, shape index: {}]
  %s1 = inlined_call_operand.vmem [shape: f32[256,64], index: 1, kind: input, shape index: {}]
  %s2 = inlined_call_operand.vmem [shape: f32[256,256], index: 2, kind: input, shape index: {}]
  %s3 = inlined_call_operand.vmem [shape: f32[256,3], index: 3, kind: input, shape index: {}]
  %s4 = inlined_call_operand.<no memory space> [shape: f32[1], index: 4, kind: input, shape index: {}]
  %s5 = inlined_call_operand.hbm [shape: f32[2,1,16], index: 5, kind: output, shape index: {}]
  %s6 = sld [smem:[#allocation0]]
  $region53: #{tpu_custom_call.1} parent=0
    _
  %s8 = ssub.s32 1, %s6
  %s9 = scalar_select 0, %s8, %s6
  %10 = sst [smem:[#allocation2]] %s4
  $region1: #{tpu_custom_call.1} parent=0
    #allocation3 [shape = 'u8[1024]{0}', space=vmem, size = 0x400, scoped, tag = 'output window, operand 0']
    #allocation4 [shape = 's32[2]{0}', space=sflag, size = 0x8, scoped, tag = 'scoped memory for tpu_custom_call.1']
    %11 = vsyncpa [#allocation4], 0
    %s12 = scalar_lea.sflag [#allocation4], 1
    %13 = vsyncpa %s12, 0
    loop: start=0, step=1, limit=4
    $region2: #{tpu_custom_call.1} parent=1 // loop_pre_header
      _
    $region3: #{tpu_custom_call.1} parent=1 // loop_header
      %s15 = sphi 0, %s19
      %p16 = scmp.ge.s32.totalorder %s15, 4
      %s22 = sphi 0, %s34
      %s23 = sphi 0, %s30
      %s24 = sphi 0, %s22
      %s25 = sphi 0, %s23
      %s26 = sphi 0, %s24
      %s27 = sphi 0, %s25
      %s39 = sphi 0, %s41
      %s42 = sphi 0, %s39
      %s43 = sphi 0, %s42
      %s59 = sphi 0, %s43
      %s63 = sphi 0, %s63
      %s65 = sphi 0, %s63
      %s66 = sphi 0, %s65
      %s80 = sphi 0, %s66
      %s84 = sphi 0, %s84
      %s86 = sphi 0, %s84
      %s87 = sphi 0, %s86
      %s101 = sphi 0, %s87
      %s105 = sphi 0, %s105
      %s107 = sphi 0, %s105
      %s108 = sphi 0, %s107
      %s122 = sphi 0, %s108
      %s126 = sphi 0, %s126
      %s128 = sphi 0, %s126
      %s129 = sphi 0, %s128
      %s143 = sphi 0, %s129
      %s151 = sphi 0, %s153
      %s154 = sphi 0, %s151
      %s155 = sphi 0, %s154
      %s171 = sphi 0, %s155
    $region4: #{tpu_custom_call.1} parent=1 // loop_header_branch
      %18 = sbr.rel (%p16) target = $region8
    $region5: #{tpu_custom_call.1} parent=1 // loop_body
      %s20 = ssub.s32 %s15, 1
      %s21 = ssub.s32 %s15, 2
      %s28 = sadd.s32 1, %s23
      %p29 = scmp.ge.s32.totalorder %s28, 1
      %s30 = scalar_select %p29, 0, %s28
      %s31 = sadd.s32 1, %s22
      %s32 = scalar_select %p29, %s31, %s22
      %p33 = scmp.ge.s32.totalorder %s32, 2
      %s34 = scalar_select %p33, 0, %s32
      %s35 = ssub.s32 %s22, %s34
      %s36 = ssub.s32 %s23, %s30
      %s37 = sor.u32 %s35, %s36
      %p38 = scmp.eq.s32.totalorder %s37, 0
      %s40 = sadd.s32 %s39, 1
      %s41 = scalar_select %p38, %s39, %s40
      %p44 = pneg %p38
      %p45 = scmp.eq.s32.totalorder %s15, 1
      %p46 = por %p44, %p45
      %p47 = scmp.ne.s32.totalorder %s39, %s42
      %p48 = scmp.eq.s32.totalorder %s15, 0
      %p49 = por %p47, %p48
      %p50 = scmp.ne.s32.totalorder %s39, %s42
      %p51 = scmp.eq.s32.totalorder %s20, 1
      %p52 = por %p50, %p51
      %p53 = scmp.ne.s32.totalorder %s42, %s43
      %p54 = scmp.eq.s32.totalorder %s20, 0
      %p55 = por %p53, %p54
      %p56 = scmp.ne.s32.totalorder %s42, %s43
      %p57 = scmp.eq.s32.totalorder %s21, 1
      %p58 = por %p56, %p57
      %p60 = scmp.ne.s32.totalorder %s43, %s59
      %p61 = scmp.eq.s32.totalorder %s21, 0
      %p62 = por %p60, %p61
      %s64 = sadd.s32 %s63, 1
      %p67 = scmp.eq.s32.totalorder %s15, 1
      %p68 = scmp.ne.s32.totalorder %s63, %s65
      %p69 = scmp.eq.s32.totalorder %s15, 0
      %p70 = por %p68, %p69
      %p71 = scmp.ne.s32.totalorder %s63, %s65
      %p72 = scmp.eq.s32.totalorder %s20, 1
      %p73 = por %p71, %p72
      %p74 = scmp.ne.s32.totalorder %s65, %s66
      %p75 = scmp.eq.s32.totalorder %s20, 0
      %p76 = por %p74, %p75
      %p77 = scmp.ne.s32.totalorder %s65, %s66
      %p78 = scmp.eq.s32.totalorder %s21, 1
      %p79 = por %p77, %p78
      %p81 = scmp.ne.s32.totalorder %s66, %s80
      %p82 = scmp.eq.s32.totalorder %s21, 0
      %p83 = por %p81, %p82
      %s85 = sadd.s32 %s84, 1
      %p88 = scmp.eq.s32.totalorder %s15, 1
      %p89 = scmp.ne.s32.totalorder %s84, %s86
      %p90 = scmp.eq.s32.totalorder %s15, 0
      %p91 = por %p89, %p90
      %p92 = scmp.ne.s32.totalorder %s84, %s86
      %p93 = scmp.eq.s32.totalorder %s20, 1
      %p94 = por %p92, %p93
      %p95 = scmp.ne.s32.totalorder %s86, %s87
      %p96 = scmp.eq.s32.totalorder %s20, 0
      %p97 = por %p95, %p96
      %p98 = scmp.ne.s32.totalorder %s86, %s87
      %p99 = scmp.eq.s32.totalorder %s21, 1
      %p100 = por %p98, %p99
      %p102 = scmp.ne.s32.totalorder %s87, %s101
      %p103 = scmp.eq.s32.totalorder %s21, 0
      %p104 = por %p102, %p103
      %s106 = sadd.s32 %s105, 1
      %p109 = scmp.eq.s32.totalorder %s15, 1
      %p110 = scmp.ne.s32.totalorder %s105, %s107
      %p111 = scmp.eq.s32.totalorder %s15, 0
      %p112 = por %p110, %p111
      %p113 = scmp.ne.s32.totalorder %s105, %s107
      %p114 = scmp.eq.s32.totalorder %s20, 1
      %p115 = por %p113, %p114
      %p116 = scmp.ne.s32.totalorder %s107, %s108
      %p117 = scmp.eq.s32.totalorder %s20, 0
      %p118 = por %p116, %p117
      %p119 = scmp.ne.s32.totalorder %s107, %s108
      %p120 = scmp.eq.s32.totalorder %s21, 1
      %p121 = por %p119, %p120
      %p123 = scmp.ne.s32.totalorder %s108, %s122
      %p124 = scmp.eq.s32.totalorder %s21, 0
      %p125 = por %p123, %p124
      %s127 = sadd.s32 %s126, 1
      %p130 = scmp.eq.s32.totalorder %s15, 1
      %p131 = scmp.ne.s32.totalorder %s126, %s128
      %p132 = scmp.eq.s32.totalorder %s15, 0
      %p133 = por %p131, %p132
      %p134 = scmp.ne.s32.totalorder %s126, %s128
      %p135 = scmp.eq.s32.totalorder %s20, 1
      %p136 = por %p134, %p135
      %p137 = scmp.ne.s32.totalorder %s128, %s129
      %p138 = scmp.eq.s32.totalorder %s20, 0
      %p139 = por %p137, %p138
      %p140 = scmp.ne.s32.totalorder %s128, %s129
      %p141 = scmp.eq.s32.totalorder %s21, 1
      %p142 = por %p140, %p141
      %p144 = scmp.ne.s32.totalorder %s129, %s143
      %p145 = scmp.eq.s32.totalorder %s21, 0
      %p146 = por %p144, %p145
      %s147 = ssub.s32 %s22, %s34
      %s148 = ssub.s32 %s23, %s30
      %s149 = sor.u32 %s147, %s148
      %p150 = scmp.eq.s32.totalorder %s149, 0
      %s152 = sadd.s32 %s151, 1
      %s153 = scalar_select %p150, %s151, %s152
      %p156 = pneg %p150
      %p157 = scmp.eq.s32.totalorder %s15, 1
      %p158 = por %p156, %p157
      %p159 = scmp.ne.s32.totalorder %s151, %s154
      %p160 = scmp.eq.s32.totalorder %s15, 0
      %p161 = por %p159, %p160
      %p162 = scmp.ne.s32.totalorder %s151, %s154
      %p163 = scmp.eq.s32.totalorder %s20, 1
      %p164 = por %p162, %p163
      %p165 = scmp.ne.s32.totalorder %s154, %s155
      %p166 = scmp.eq.s32.totalorder %s20, 0
      %p167 = por %p165, %p166
      %p168 = scmp.ne.s32.totalorder %s154, %s155
      %p169 = scmp.eq.s32.totalorder %s21, 1
      %p170 = por %p168, %p169
      %p172 = scmp.ne.s32.totalorder %s155, %s171
      %p173 = scmp.eq.s32.totalorder %s21, 0
      %p174 = por %p172, %p173
      %p175 = scmp.le.s32.totalorder 1, %s15
      %p176 = scmp.lt.s32.totalorder %s15, 3
      %p177 = pnand %p175, %p176
      %p178 = pneg %p177
      // Predicated region
      $region9: #{tpu_custom_call.1} parent=5 // pred_check
        _
      $region10: #{tpu_custom_call.1} parent=5 // pred_check_branch
        %180 = sbr.rel (%p177) target = $region12
      $region11: #{tpu_custom_call.1} parent=5 // pred_region
        %s181 = ssub.s32 %s15, 1
        // Predicated region
        $region13: #{tpu_custom_call.1} parent=11 // pred_check
          %p182 = pneg %p76
        $region14: #{tpu_custom_call.1} parent=11 // pred_check_branch
          %184 = sbr.rel (%p182) target = $region16
        $region15: #{tpu_custom_call.1} parent=11 // pred_region
          _
        $region16: #{tpu_custom_call.1} parent=11 // pred_fallthru
          _
        // Predicated region
        $region17: #{tpu_custom_call.1} parent=11 // pred_check
          %p185 = pneg %p97
        $region18: #{tpu_custom_call.1} parent=11 // pred_check_branch
          %187 = sbr.rel (%p185) target = $region20
        $region19: #{tpu_custom_call.1} parent=11 // pred_region
          _
        $region20: #{tpu_custom_call.1} parent=11 // pred_fallthru
          _
        // Predicated region
        $region21: #{tpu_custom_call.1} parent=11 // pred_check
          %p188 = pneg %p118
        $region22: #{tpu_custom_call.1} parent=11 // pred_check_branch
          %190 = sbr.rel (%p188) target = $region24
        $region23: #{tpu_custom_call.1} parent=11 // pred_region
          _
        $region24: #{tpu_custom_call.1} parent=11 // pred_fallthru
          _
        // Predicated region
        $region25: #{tpu_custom_call.1} parent=11 // pred_check
          %p191 = pneg %p139
        $region26: #{tpu_custom_call.1} parent=11 // pred_check_branch
          %193 = sbr.rel (%p191) target = $region28
        $region27: #{tpu_custom_call.1} parent=11 // pred_region
          _
        $region28: #{tpu_custom_call.1} parent=11 // pred_fallthru
          _
      $region12: #{tpu_custom_call.1} parent=5 // pred_fallthru
        _
      %p194 = scmp.lt.s32.totalorder %s15, 2
      // Predicated region
      $region29: #{tpu_custom_call.1} parent=5 // pred_check
        %p195 = pneg %p194
      $region30: #{tpu_custom_call.1} parent=5 // pred_check_branch
        %197 = sbr.rel (%p195) target = $region32
      $region31: #{tpu_custom_call.1} parent=5 // pred_region
        // Predicated region
        $region33: #{tpu_custom_call.1} parent=31 // pred_check
          %p198 = pneg %p49
        $region34: #{tpu_custom_call.1} parent=31 // pred_check_branch
          %200 = sbr.rel (%p198) target = $region36
        $region35: #{tpu_custom_call.1} parent=31 // pred_region
          %p201 = scmp.lt.s32.totalorder %s22, 1
          %s202 = scalar_select %p201, %s22, 1
          %p203 = scmp.lt.s32.totalorder %s23, 0
          %s204 = scalar_select %p203, %s23, 0
          %s205 = smul.addr %s202, 8
          %s206 = sadd.s32 %s204, %s205
          %s207 = smul.addr %s206, 8
          %s208 = scalar_lea.vmem %s0, %s207
        $region36: #{tpu_custom_call.1} parent=31 // pred_fallthru
          _
      $region32: #{tpu_custom_call.1} parent=5 // pred_fallthru
        _
      %p209 = scmp.le.s32.totalorder 1, %s15
      %p210 = scmp.lt.s32.totalorder %s15, 3
      %p211 = pnand %p209, %p210
      %p212 = pneg %p211
      // Predicated region
      $region37: #{tpu_custom_call.1} parent=5 // pred_check
        _
      $region38: #{tpu_custom_call.1} parent=5 // pred_check_branch
        %214 = sbr.rel (%p211) target = $region40
      $region39: #{tpu_custom_call.1} parent=5 // pred_region
        %s215 = ssub.s32 %s15, 1
        %p216 = scmp.lt.s32.totalorder %s24, 1
        %s217 = scalar_select %p216, %s24, 1
        %p218 = scmp.lt.s32.totalorder %s25, 0
        %s219 = scalar_select %p218, %s25, 0
        %s220 = smul.addr %s217, 8
        %s221 = sadd.s32 %s219, %s220
        %s222 = smul.addr %s221, 8
        %s223 = scalar_lea.vmem %s0, %s222
        %p224 = pneg %p55
        %p225 = pneg %p52
        %p226 = pneg %p76
        %p227 = pneg %p73
        %p228 = pneg %p97
        %p229 = pneg %p94
        %p230 = pneg %p118
        %p231 = pneg %p115
        %p232 = pneg %p139
        %p233 = pneg %p136
        %p234 = pneg %p167
        %p235 = pneg %p164
        %s236 = sand.u32 %s154, 1
        %s237 = scalar_lea.sflag [#allocation4], %s236
        %s238 = sand.u32 %s154, 1
        %s239 = scalar_lea.vmem [#allocation3], %s238
        %p240 = scmp.lt.s32.totalorder %s24, 1
        %s241 = scalar_select %p240, %s24, 1
        %p242 = scmp.lt.s32.totalorder %s25, 0
        %s243 = scalar_select %p242, %s25, 0
        %s244 = smul.addr %s241, 8
        %s245 = sadd.s32 %s243, %s244
        %s246 = smul.addr %s245, 8
        %s247 = scalar_lea.vmem %s0, %s246
        %v248 = vld [vmem:[%s247] sm:$0xff]
        %v249 = vld [vmem:[%s247 + $0x8] sm:$0xff]
        %v250 = vld [vmem:[%s247 + $0x10] sm:$0xff]
        %v251 = vld [vmem:[%s247 + $0x18] sm:$0xff]
        %v252 = vld [vmem:[%s247 + $0x20] sm:$0xff]
        %v253 = vld [vmem:[%s247 + $0x28] sm:$0xff]
        %v254 = vld [vmem:[%s247 + $0x30] sm:$0xff]
        %v255 = vld [vmem:[%s247 + $0x38] sm:$0xff]
        %v256 = vld [vmem:[%s3] sm:$0xff]
        %v257 = vld [vmem:[%s3 + $0x8] sm:$0xff]
        %v258 = vld [vmem:[%s3 + $0x10] sm:$0xff]
        %v259 = vld [vmem:[%s3 + $0x18] sm:$0xff]
        %v260 = vld [vmem:[%s3 + $0x20] sm:$0xff]
        %v261 = vld [vmem:[%s3 + $0x28] sm:$0xff]
        %v262 = vld [vmem:[%s3 + $0x30] sm:$0xff]
        %v263 = vld [vmem:[%s3 + $0x38] sm:$0xff]
        %v264 = vld [vmem:[%s3 + $0x40] sm:$0xff]
        %v265 = vld [vmem:[%s3 + $0x48] sm:$0xff]
        %v266 = vld [vmem:[%s3 + $0x50] sm:$0xff]
        %v267 = vld [vmem:[%s3 + $0x58] sm:$0xff]
        %v268 = vld [vmem:[%s3 + $0x60] sm:$0xff]
        %v269 = vld [vmem:[%s3 + $0x68] sm:$0xff]
        %v270 = vld [vmem:[%s3 + $0x70] sm:$0xff]
        %v271 = vld [vmem:[%s3 + $0x78] sm:$0xff]
        %v272 = vld [vmem:[%s3 + $0x80] sm:$0xff]
        %v273 = vld [vmem:[%s3 + $0x88] sm:$0xff]
        %v274 = vld [vmem:[%s3 + $0x90] sm:$0xff]
        %v275 = vld [vmem:[%s3 + $0x98] sm:$0xff]
        %v276 = vld [vmem:[%s3 + $0xa0] sm:$0xff]
        %v277 = vld [vmem:[%s3 + $0xa8] sm:$0xff]
        %v278 = vld [vmem:[%s3 + $0xb0] sm:$0xff]
        %v279 = vld [vmem:[%s3 + $0xb8] sm:$0xff]
        %v280 = vld [vmem:[%s3 + $0xc0] sm:$0xff]
        %v281 = vld [vmem:[%s3 + $0xc8] sm:$0xff]
        %v282 = vld [vmem:[%s3 + $0xd0] sm:$0xff]
        %v283 = vld [vmem:[%s3 + $0xd8] sm:$0xff]
        %v284 = vld [vmem:[%s3 + $0xe0] sm:$0xff]
        %v285 = vld [vmem:[%s3 + $0xe8] sm:$0xff]
        %v286 = vld [vmem:[%s3 + $0xf0] sm:$0xff]
        %v287 = vld [vmem:[%s3 + $0xf8] sm:$0xff]
        %v288 = vld [vmem:[%s1] sm:$0xff]
        %v289 = vld [vmem:[%s1 + $0x8] sm:$0xff]
        %v290 = vld [vmem:[%s1 + $0x10] sm:$0xff]
        %v291 = vld [vmem:[%s1 + $0x18] sm:$0xff]
        %v292 = vld [vmem:[%s1 + $0x20] sm:$0xff]
        %v293 = vld [vmem:[%s1 + $0x28] sm:$0xff]
        %v294 = vld [vmem:[%s1 + $0x30] sm:$0xff]
        %v295 = vld [vmem:[%s1 + $0x38] sm:$0xff]
        %v296 = vld [vmem:[%s1 + $0x40] sm:$0xff]
        %v297 = vld [vmem:[%s1 + $0x48] sm:$0xff]
        %v298 = vld [vmem:[%s1 + $0x50] sm:$0xff]
        %v299 = vld [vmem:[%s1 + $0x58] sm:$0xff]
        %v300 = vld [vmem:[%s1 + $0x60] sm:$0xff]
        %v301 = vld [vmem:[%s1 + $0x68] sm:$0xff]
        %v302 = vld [vmem:[%s1 + $0x70] sm:$0xff]
        %v303 = vld [vmem:[%s1 + $0x78] sm:$0xff]
        %v304 = vld [vmem:[%s1 + $0x80] sm:$0xff]
        %v305 = vld [vmem:[%s1 + $0x88] sm:$0xff]
        %v306 = vld [vmem:[%s1 + $0x90] sm:$0xff]
        %v307 = vld [vmem:[%s1 + $0x98] sm:$0xff]
        %v308 = vld [vmem:[%s1 + $0xa0] sm:$0xff]
        %v309 = vld [vmem:[%s1 + $0xa8] sm:$0xff]
        %v310 = vld [vmem:[%s1 + $0xb0] sm:$0xff]
        %v311 = vld [vmem:[%s1 + $0xb8] sm:$0xff]
        %v312 = vld [vmem:[%s1 + $0xc0] sm:$0xff]
        %v313 = vld [vmem:[%s1 + $0xc8] sm:$0xff]
        %v314 = vld [vmem:[%s1 + $0xd0] sm:$0xff]
        %v315 = vld [vmem:[%s1 + $0xd8] sm:$0xff]
        %v316 = vld [vmem:[%s1 + $0xe0] sm:$0xff]
        %v317 = vld [vmem:[%s1 + $0xe8] sm:$0xff]
        %v318 = vld [vmem:[%s1 + $0xf0] sm:$0xff]
        %v319 = vld [vmem:[%s1 + $0xf8] sm:$0xff]
        %321 = vset.pattern.permute.xlu0 0
        %322 = vperm.xlu0 %321, %v256
        %v323 = vpop.permute.xlu0 %322
        %326 = vset.pattern.permute.xlu0 0
        %327 = vperm.xlu0 %326, %v257
        %v328 = vpop.permute.xlu0 %327
        %331 = vset.pattern.permute.xlu0 0
        %332 = vperm.xlu0 %331, %v258
        %v333 = vpop.permute.xlu0 %332
        %336 = vset.pattern.permute.xlu0 0
        %337 = vperm.xlu0 %336, %v259
        %v338 = vpop.permute.xlu0 %337
        %341 = vset.pattern.permute.xlu0 0
        %342 = vperm.xlu0 %341, %v260
        %v343 = vpop.permute.xlu0 %342
        %346 = vset.pattern.permute.xlu0 0
        %347 = vperm.xlu0 %346, %v261
        %v348 = vpop.permute.xlu0 %347
        %351 = vset.pattern.permute.xlu0 0
        %352 = vperm.xlu0 %351, %v262
        %v353 = vpop.permute.xlu0 %352
        %356 = vset.pattern.permute.xlu0 0
        %357 = vperm.xlu0 %356, %v263
        %v358 = vpop.permute.xlu0 %357
        %361 = vset.pattern.permute.xlu0 0
        %362 = vperm.xlu0 %361, %v264
        %v363 = vpop.permute.xlu0 %362
        %366 = vset.pattern.permute.xlu0 0
        %367 = vperm.xlu0 %366, %v265
        %v368 = vpop.permute.xlu0 %367
        %371 = vset.pattern.permute.xlu0 0
        %372 = vperm.xlu0 %371, %v266
        %v373 = vpop.permute.xlu0 %372
        %376 = vset.pattern.permute.xlu0 0
        %377 = vperm.xlu0 %376, %v267
        %v378 = vpop.permute.xlu0 %377
        %381 = vset.pattern.permute.xlu0 0
        %382 = vperm.xlu0 %381, %v268
        %v383 = vpop.permute.xlu0 %382
        %386 = vset.pattern.permute.xlu0 0
        %387 = vperm.xlu0 %386, %v269
        %v388 = vpop.permute.xlu0 %387
        %391 = vset.pattern.permute.xlu0 0
        %392 = vperm.xlu0 %391, %v270
        %v393 = vpop.permute.xlu0 %392
        %396 = vset.pattern.permute.xlu0 0
        %397 = vperm.xlu0 %396, %v271
        %v398 = vpop.permute.xlu0 %397
        %401 = vset.pattern.permute.xlu0 0
        %402 = vperm.xlu0 %401, %v272
        %v403 = vpop.permute.xlu0 %402
        %406 = vset.pattern.permute.xlu0 0
        %407 = vperm.xlu0 %406, %v273
        %v408 = vpop.permute.xlu0 %407
        %411 = vset.pattern.permute.xlu0 0
        %412 = vperm.xlu0 %411, %v274
        %v413 = vpop.permute.xlu0 %412
        %416 = vset.pattern.permute.xlu0 0
        %417 = vperm.xlu0 %416, %v275
        %v418 = vpop.permute.xlu0 %417
        %421 = vset.pattern.permute.xlu0 0
        %422 = vperm.xlu0 %421, %v276
        %v423 = vpop.permute.xlu0 %422
        %426 = vset.pattern.permute.xlu0 0
        %427 = vperm.xlu0 %426, %v277
        %v428 = vpop.permute.xlu0 %427
        %431 = vset.pattern.permute.xlu0 0
        %432 = vperm.xlu0 %431, %v278
        %v433 = vpop.permute.xlu0 %432
        %436 = vset.pattern.permute.xlu0 0
        %437 = vperm.xlu0 %436, %v279
        %v438 = vpop.permute.xlu0 %437
        %441 = vset.pattern.permute.xlu0 0
        %442 = vperm.xlu0 %441, %v280
        %v443 = vpop.permute.xlu0 %442
        %446 = vset.pattern.permute.xlu0 0
        %447 = vperm.xlu0 %446, %v281
        %v448 = vpop.permute.xlu0 %447
        %451 = vset.pattern.permute.xlu0 0
        %452 = vperm.xlu0 %451, %v282
        %v453 = vpop.permute.xlu0 %452
        %456 = vset.pattern.permute.xlu0 0
        %457 = vperm.xlu0 %456, %v283
        %v458 = vpop.permute.xlu0 %457
        %461 = vset.pattern.permute.xlu0 0
        %462 = vperm.xlu0 %461, %v284
        %v463 = vpop.permute.xlu0 %462
        %466 = vset.pattern.permute.xlu0 0
        %467 = vperm.xlu0 %466, %v285
        %v468 = vpop.permute.xlu0 %467
        %471 = vset.pattern.permute.xlu0 0
        %472 = vperm.xlu0 %471, %v286
        %v473 = vpop.permute.xlu0 %472
        %476 = vset.pattern.permute.xlu0 0
        %477 = vperm.xlu0 %476, %v287
        %v478 = vpop.permute.xlu0 %477
        %vm480 = vcmask 523264
        %v482 = vsel %vm480, %v288, 0
        %v485 = vsel %vm480, %v289, 0
        %v488 = vsel %vm480, %v290, 0
        %v491 = vsel %vm480, %v291, 0
        %v494 = vsel %vm480, %v292, 0
        %v497 = vsel %vm480, %v293, 0
        %v500 = vsel %vm480, %v294, 0
        %v503 = vsel %vm480, %v295, 0
        %v506 = vsel %vm480, %v296, 0
        %v509 = vsel %vm480, %v297, 0
        %v512 = vsel %vm480, %v298, 0
        %v515 = vsel %vm480, %v299, 0
        %v518 = vsel %vm480, %v300, 0
        %v521 = vsel %vm480, %v301, 0
        %v524 = vsel %vm480, %v302, 0
        %v527 = vsel %vm480, %v303, 0
        %v530 = vsel %vm480, %v304, 0
        %v533 = vsel %vm480, %v305, 0
        %v536 = vsel %vm480, %v306, 0
        %v539 = vsel %vm480, %v307, 0
        %v542 = vsel %vm480, %v308, 0
        %v545 = vsel %vm480, %v309, 0
        %v548 = vsel %vm480, %v310, 0
        %v551 = vsel %vm480, %v311, 0
        %v554 = vsel %vm480, %v312, 0
        %v557 = vsel %vm480, %v313, 0
        %v560 = vsel %vm480, %v314, 0
        %v563 = vsel %vm480, %v315, 0
        %v566 = vsel %vm480, %v316, 0
        %v569 = vsel %vm480, %v317, 0
        %v572 = vsel %vm480, %v318, 0
        %v575 = vsel %vm480, %v319, 0
        %577 = vmatprep.subr.mxu0 0.0
        %578 = vmatpush1.msra.mxu0 %v248
        %579 = vmatprep.subr.mxu0 0.0
        %580 = vmatpush1.msra.mxu0 %v249
        %581 = vmatprep.subr.mxu0 0.0
        %582 = vmatpush1.msra.mxu0 %v250
        %583 = vmatprep.subr.mxu0 0.0
        %584 = vmatpush1.msra.mxu0 %v251
        %585 = vmatprep.subr.mxu0 0.0
        %586 = vmatpush1.msra.mxu0 %v252
        %587 = vmatprep.subr.mxu0 0.0
        %588 = vmatpush1.msra.mxu0 %v253
        %589 = vmatprep.subr.mxu0 0.0
        %590 = vmatpush1.msra.mxu0 %v254
        %591 = vmatprep.subr.mxu0 0.0
        %592 = vmatpush1.msra.mxu0 %v255
        %593 = vmatprep.subr.mxu0 0.0
        %594 = vmatpush1.msra.mxu0 0.0
        %595 = vmatprep.subr.mxu0 0.0
        %596 = vmatpush1.msra.mxu0 0.0
        %597 = vmatprep.subr.mxu0 0.0
        %598 = vmatpush1.msra.mxu0 0.0
        %599 = vmatprep.subr.mxu0 0.0
        %600 = vmatpush1.msra.mxu0 0.0
        %601 = vmatprep.subr.mxu0 0.0
        %602 = vmatpush1.msra.mxu0 0.0
        %603 = vmatprep.subr.mxu0 0.0
        %604 = vmatpush1.msra.mxu0 0.0
        %605 = vmatprep.subr.mxu0 0.0
        %606 = vmatpush1.msra.mxu0 0.0
        %607 = vmatprep.subr.mxu0 0.0
        %608 = vmatpush1.msra.mxu0 0.0
        %609 = vmatprep.subr.mxu0 0.0
        %610 = vmatpush1.msra.mxu0 0.0
        %611 = vmatprep.subr.mxu0 0.0
        %612 = vmatpush1.msra.mxu0 0.0
        %613 = vmatprep.subr.mxu0 0.0
        %614 = vmatpush1.msra.mxu0 0.0
        %615 = vmatprep.subr.mxu0 0.0
        %616 = vmatpush1.msra.mxu0 0.0
        %617 = vmatprep.subr.mxu0 0.0
        %618 = vmatpush1.msra.mxu0 0.0
        %619 = vmatprep.subr.mxu0 0.0
        %620 = vmatpush1.msra.mxu0 0.0
        %621 = vmatprep.subr.mxu0 0.0
        %622 = vmatpush1.msra.mxu0 0.0
        %623 = vmatprep.subr.mxu0 0.0
        %624 = vmatpush1.msra.mxu0 0.0
        %625 = vmatprep.subr.mxu0 0.0
        %626 = vmatpush1.msra.mxu0 0.0
        %627 = vmatprep.subr.mxu0 0.0
        %628 = vmatpush1.msra.mxu0 0.0
        %629 = vmatprep.subr.mxu0 0.0
        %630 = vmatpush1.msra.mxu0 0.0
        %631 = vmatprep.subr.mxu0 0.0
        %632 = vmatpush1.msra.mxu0 0.0
        %633 = vmatprep.subr.mxu0 0.0
        %634 = vmatpush1.msra.mxu0 0.0
        %635 = vmatprep.subr.mxu0 0.0
        %636 = vmatpush1.msra.mxu0 0.0
        %637 = vmatprep.subr.mxu0 0.0
        %638 = vmatpush1.msra.mxu0 0.0
        %639 = vmatprep.subr.mxu0 0.0
        %640 = vmatpush1.msra.mxu0 0.0
        %641 = vmatprep.mubr.f32.mxu0 0.0
        %642 = vmatmul.mubr.f32.gmra.mrb[0].mxu0 %v482
        %v643 = vpop.f32.mrb[0].mxu0
        %v644 = vadd.f32 %v323, %v643
        %v645 = vpop.f32.mrb[0].mxu0
        %646 = vmatprep.mubr.f32.mxu0 0.0
        %647 = vmatmul.mubr.f32.gmra.mrb[0].mxu0 %v485
        %v648 = vpop.f32.mrb[0].mxu0
        %v649 = vadd.f32 %v328, %v648
        %v650 = vpop.f32.mrb[0].mxu0
        %651 = vmatprep.mubr.f32.mxu0 0.0
        %652 = vmatmul.mubr.f32.gmra.mrb[0].mxu0 %v488
        %v653 = vpop.f32.mrb[0].mxu0
        %v654 = vadd.f32 %v333, %v653
        %v655 = vpop.f32.mrb[0].mxu0
        %656 = vmatprep.mubr.f32.mxu0 0.0
        %657 = vmatmul.mubr.f32.gmra.mrb[0].mxu0 %v491
        %v658 = vpop.f32.mrb[0].mxu0
        %v659 = vadd.f32 %v338, %v658
        %v660 = vpop.f32.mrb[0].mxu0
        %661 = vmatprep.mubr.f32.mxu0 0.0
        %662 = vmatmul.mubr.f32.gmra.mrb[0].mxu0 %v494
        %v663 = vpop.f32.mrb[0].mxu0
        %v664 = vadd.f32 %v343, %v663
        %v665 = vpop.f32.mrb[0].mxu0
        %666 = vmatprep.mubr.f32.mxu0 0.0
        %667 = vmatmul.mubr.f32.gmra.mrb[0].mxu0 %v497
        %v668 = vpop.f32.mrb[0].mxu0
        %v669 = vadd.f32 %v348, %v668
        %v670 = vpop.f32.mrb[0].mxu0
        %671 = vmatprep.mubr.f32.mxu0 0.0
        %672 = vmatmul.mubr.f32.gmra.mrb[0].mxu0 %v500
        %v673 = vpop.f32.mrb[0].mxu0
        %v674 = vadd.f32 %v353, %v673
        %v675 = vpop.f32.mrb[0].mxu0
        %676 = vmatprep.mubr.f32.mxu0 0.0
        %677 = vmatmul.mubr.f32.gmra.mrb[0].mxu0 %v503
        %v678 = vpop.f32.mrb[0].mxu0
        %v679 = vadd.f32 %v358, %v678
        %v680 = vpop.f32.mrb[0].mxu0
        %681 = vmatprep.mubr.f32.mxu0 0.0
        %682 = vmatmul.mubr.f32.gmra.mrb[0].mxu0 %v506
        %v683 = vpop.f32.mrb[0].mxu0
        %v684 = vadd.f32 %v363, %v683
        %v685 = vpop.f32.mrb[0].mxu0
        %686 = vmatprep.mubr.f32.mxu0 0.0
        %687 = vmatmul.mubr.f32.gmra.mrb[0].mxu0 %v509
        %v688 = vpop.f32.mrb[0].mxu0
        %v689 = vadd.f32 %v368, %v688
        %v690 = vpop.f32.mrb[0].mxu0
        %691 = vmatprep.mubr.f32.mxu0 0.0
        %692 = vmatmul.mubr.f32.gmra.mrb[0].mxu0 %v512
        %v693 = vpop.f32.mrb[0].mxu0
        %v694 = vadd.f32 %v373, %v693
        %v695 = vpop.f32.mrb[0].mxu0
        %696 = vmatprep.mubr.f32.mxu0 0.0
        %697 = vmatmul.mubr.f32.gmra.mrb[0].mxu0 %v515
        %v698 = vpop.f32.mrb[0].mxu0
        %v699 = vadd.f32 %v378, %v698
        %v700 = vpop.f32.mrb[0].mxu0
        %701 = vmatprep.mubr.f32.mxu0 0.0
        %702 = vmatmul.mubr.f32.gmra.mrb[0].mxu0 %v518
        %v703 = vpop.f32.mrb[0].mxu0
        %v704 = vadd.f32 %v383, %v703
        %v705 = vpop.f32.mrb[0].mxu0
        %706 = vmatprep.mubr.f32.mxu0 0.0
        %707 = vmatmul.mubr.f32.gmra.mrb[0].mxu0 %v521
        %v708 = vpop.f32.mrb[0].mxu0
        %v709 = vadd.f32 %v388, %v708
        %v710 = vpop.f32.mrb[0].mxu0
        %711 = vmatprep.mubr.f32.mxu0 0.0
        %712 = vmatmul.mubr.f32.gmra.mrb[0].mxu0 %v524
        %v713 = vpop.f32.mrb[0].mxu0
        %v714 = vadd.f32 %v393, %v713
        %v715 = vpop.f32.mrb[0].mxu0
        %716 = vmatprep.mubr.f32.mxu0 0.0
        %717 = vmatmul.mubr.f32.gmra.mrb[0].mxu0 %v527
        %v718 = vpop.f32.mrb[0].mxu0
        %v719 = vadd.f32 %v398, %v718
        %v720 = vpop.f32.mrb[0].mxu0
        %721 = vmatprep.mubr.f32.mxu0 0.0
        %722 = vmatmul.mubr.f32.gmra.mrb[0].mxu0 %v530
        %v723 = vpop.f32.mrb[0].mxu0
        %v724 = vadd.f32 %v403, %v723
        %v725 = vpop.f32.mrb[0].mxu0
        %726 = vmatprep.mubr.f32.mxu0 0.0
        %727 = vmatmul.mubr.f32.gmra.mrb[0].mxu0 %v533
        %v728 = vpop.f32.mrb[0].mxu0
        %v729 = vadd.f32 %v408, %v728
        %v730 = vpop.f32.mrb[0].mxu0
        %731 = vmatprep.mubr.f32.mxu0 0.0
        %732 = vmatmul.mubr.f32.gmra.mrb[0].mxu0 %v536
        %v733 = vpop.f32.mrb[0].mxu0
        %v734 = vadd.f32 %v413, %v733
        %v735 = vpop.f32.mrb[0].mxu0
        %736 = vmatprep.mubr.f32.mxu0 0.0
        %737 = vmatmul.mubr.f32.gmra.mrb[0].mxu0 %v539
        %v738 = vpop.f32.mrb[0].mxu0
        %v739 = vadd.f32 %v418, %v738
        %v740 = vpop.f32.mrb[0].mxu0
        %741 = vmatprep.mubr.f32.mxu0 0.0
        %742 = vmatmul.mubr.f32.gmra.mrb[0].mxu0 %v542
        %v743 = vpop.f32.mrb[0].mxu0
        %v744 = vadd.f32 %v423, %v743
        %v745 = vpop.f32.mrb[0].mxu0
        %746 = vmatprep.mubr.f32.mxu0 0.0
        %747 = vmatmul.mubr.f32.gmra.mrb[0].mxu0 %v545
        %v748 = vpop.f32.mrb[0].mxu0
        %v749 = vadd.f32 %v428, %v748
        %v750 = vpop.f32.mrb[0].mxu0
        %751 = vmatprep.mubr.f32.mxu0 0.0
        %752 = vmatmul.mubr.f32.gmra.mrb[0].mxu0 %v548
        %v753 = vpop.f32.mrb[0].mxu0
        %v754 = vadd.f32 %v433, %v753
        %v755 = vpop.f32.mrb[0].mxu0
        %756 = vmatprep.mubr.f32.mxu0 0.0
        %757 = vmatmul.mubr.f32.gmra.mrb[0].mxu0 %v551
        %v758 = vpop.f32.mrb[0].mxu0
        %v759 = vadd.f32 %v438, %v758
        %v760 = vpop.f32.mrb[0].mxu0
        %761 = vmatprep.mubr.f32.mxu0 0.0
        %762 = vmatmul.mubr.f32.gmra.mrb[0].mxu0 %v554
        %v763 = vpop.f32.mrb[0].mxu0
        %v764 = vadd.f32 %v443, %v763
        %v765 = vpop.f32.mrb[0].mxu0
        %766 = vmatprep.mubr.f32.mxu0 0.0
        %767 = vmatmul.mubr.f32.gmra.mrb[0].mxu0 %v557
        %v768 = vpop.f32.mrb[0].mxu0
        %v769 = vadd.f32 %v448, %v768
        %v770 = vpop.f32.mrb[0].mxu0
        %771 = vmatprep.mubr.f32.mxu0 0.0
        %772 = vmatmul.mubr.f32.gmra.mrb[0].mxu0 %v560
        %v773 = vpop.f32.mrb[0].mxu0
        %v774 = vadd.f32 %v453, %v773
        %v775 = vpop.f32.mrb[0].mxu0
        %776 = vmatprep.mubr.f32.mxu0 0.0
        %777 = vmatmul.mubr.f32.gmra.mrb[0].mxu0 %v563
        %v778 = vpop.f32.mrb[0].mxu0
        %v779 = vadd.f32 %v458, %v778
        %v780 = vpop.f32.mrb[0].mxu0
        %781 = vmatprep.mubr.f32.mxu0 0.0
        %782 = vmatmul.mubr.f32.gmra.mrb[0].mxu0 %v566
        %v783 = vpop.f32.mrb[0].mxu0
        %v784 = vadd.f32 %v463, %v783
        %v785 = vpop.f32.mrb[0].mxu0
        %786 = vmatprep.mubr.f32.mxu0 0.0
        %787 = vmatmul.mubr.f32.gmra.mrb[0].mxu0 %v569
        %v788 = vpop.f32.mrb[0].mxu0
        %v789 = vadd.f32 %v468, %v788
        %v790 = vpop.f32.mrb[0].mxu0
        %791 = vmatprep.mubr.f32.mxu0 0.0
        %792 = vmatmul.mubr.f32.gmra.mrb[0].mxu0 %v572
        %v793 = vpop.f32.mrb[0].mxu0
        %v794 = vadd.f32 %v473, %v793
        %v795 = vpop.f32.mrb[0].mxu0
        %796 = vmatprep.mubr.f32.mxu0 0.0
        %797 = vmatmul.mubr.f32.gmra.mrb[0].mxu0 %v575
        %v798 = vpop.f32.mrb[0].mxu0
        %v799 = vadd.f32 %v478, %v798
        %v800 = vpop.f32.mrb[0].mxu0
        %801 = vdwg.mxu0
        %v802 = vmax.f32 %v644, 0.0
        %v803 = vmax.f32 %v649, 0.0
        %v804 = vmax.f32 %v654, 0.0
        %v805 = vmax.f32 %v659, 0.0
        %v806 = vmax.f32 %v664, 0.0
        %v807 = vmax.f32 %v669, 0.0
        %v808 = vmax.f32 %v674, 0.0
        %v809 = vmax.f32 %v679, 0.0
        %v810 = vmax.f32 %v684, 0.0
        %v811 = vmax.f32 %v689, 0.0
        %v812 = vmax.f32 %v694, 0.0
        %v813 = vmax.f32 %v699, 0.0
        %v814 = vmax.f32 %v704, 0.0
        %v815 = vmax.f32 %v709, 0.0
        %v816 = vmax.f32 %v714, 0.0
        %v817 = vmax.f32 %v719, 0.0
        %v818 = vmax.f32 %v724, 0.0
        %v819 = vmax.f32 %v729, 0.0
        %v820 = vmax.f32 %v734, 0.0
        %v821 = vmax.f32 %v739, 0.0
        %v822 = vmax.f32 %v744, 0.0
        %v823 = vmax.f32 %v749, 0.0
        %v824 = vmax.f32 %v754, 0.0
        %v825 = vmax.f32 %v759, 0.0
        %v826 = vmax.f32 %v764, 0.0
        %v827 = vmax.f32 %v769, 0.0
        %v828 = vmax.f32 %v774, 0.0
        %v829 = vmax.f32 %v779, 0.0
        %v830 = vmax.f32 %v784, 0.0
        %v831 = vmax.f32 %v789, 0.0
        %v832 = vmax.f32 %v794, 0.0
        %v833 = vmax.f32 %v799, 0.0
        %v834 = vld [vmem:[%s2] sm:$0xff]
        %v835 = vld [vmem:[%s2 + $0x8] sm:$0xff]
        %v836 = vld [vmem:[%s2 + $0x10] sm:$0xff]
        %v837 = vld [vmem:[%s2 + $0x18] sm:$0xff]
        %v838 = vld [vmem:[%s2 + $0x20] sm:$0xff]
        %v839 = vld [vmem:[%s2 + $0x28] sm:$0xff]
        %v840 = vld [vmem:[%s2 + $0x30] sm:$0xff]
        %v841 = vld [vmem:[%s2 + $0x38] sm:$0xff]
        %v842 = vld [vmem:[%s2 + $0x40] sm:$0xff]
        %v843 = vld [vmem:[%s2 + $0x48] sm:$0xff]
        %v844 = vld [vmem:[%s2 + $0x50] sm:$0xff]
        %v845 = vld [vmem:[%s2 + $0x58] sm:$0xff]
        %v846 = vld [vmem:[%s2 + $0x60] sm:$0xff]
        %v847 = vld [vmem:[%s2 + $0x68] sm:$0xff]
        %v848 = vld [vmem:[%s2 + $0x70] sm:$0xff]
        %v849 = vld [vmem:[%s2 + $0x78] sm:$0xff]
        %v850 = vld [vmem:[%s2 + $0x80] sm:$0xff]
        %v851 = vld [vmem:[%s2 + $0x88] sm:$0xff]
        %v852 = vld [vmem:[%s2 + $0x90] sm:$0xff]
        %v853 = vld [vmem:[%s2 + $0x98] sm:$0xff]
        %v854 = vld [vmem:[%s2 + $0xa0] sm:$0xff]
        %v855 = vld [vmem:[%s2 + $0xa8] sm:$0xff]
        %v856 = vld [vmem:[%s2 + $0xb0] sm:$0xff]
        %v857 = vld [vmem:[%s2 + $0xb8] sm:$0xff]
        %v858 = vld [vmem:[%s2 + $0xc0] sm:$0xff]
        %v859 = vld [vmem:[%s2 + $0xc8] sm:$0xff]
        %v860 = vld [vmem:[%s2 + $0xd0] sm:$0xff]
        %v861 = vld [vmem:[%s2 + $0xd8] sm:$0xff]
        %v862 = vld [vmem:[%s2 + $0xe0] sm:$0xff]
        %v863 = vld [vmem:[%s2 + $0xe8] sm:$0xff]
        %v864 = vld [vmem:[%s2 + $0xf0] sm:$0xff]
        %v865 = vld [vmem:[%s2 + $0xf8] sm:$0xff]
        %v866 = vld [vmem:[%s2 + $0x100] sm:$0xff]
        %v867 = vld [vmem:[%s2 + $0x108] sm:$0xff]
        %v868 = vld [vmem:[%s2 + $0x110] sm:$0xff]
        %v869 = vld [vmem:[%s2 + $0x118] sm:$0xff]
        %v870 = vld [vmem:[%s2 + $0x120] sm:$0xff]
        %v871 = vld [vmem:[%s2 + $0x128] sm:$0xff]
        %v872 = vld [vmem:[%s2 + $0x130] sm:$0xff]
        %v873 = vld [vmem:[%s2 + $0x138] sm:$0xff]
        %v874 = vld [vmem:[%s2 + $0x140] sm:$0xff]
        %v875 = vld [vmem:[%s2 + $0x148] sm:$0xff]
        %v876 = vld [vmem:[%s2 + $0x150] sm:$0xff]
        %v877 = vld [vmem:[%s2 + $0x158] sm:$0xff]
        %v878 = vld [vmem:[%s2 + $0x160] sm:$0xff]
        %v879 = vld [vmem:[%s2 + $0x168] sm:$0xff]
        %v880 = vld [vmem:[%s2 + $0x170] sm:$0xff]
        %v881 = vld [vmem:[%s2 + $0x178] sm:$0xff]
        %v882 = vld [vmem:[%s2 + $0x180] sm:$0xff]
        %v883 = vld [vmem:[%s2 + $0x188] sm:$0xff]
        %v884 = vld [vmem:[%s2 + $0x190] sm:$0xff]
        %v885 = vld [vmem:[%s2 + $0x198] sm:$0xff]
        %v886 = vld [vmem:[%s2 + $0x1a0] sm:$0xff]
        %v887 = vld [vmem:[%s2 + $0x1a8] sm:$0xff]
        %v888 = vld [vmem:[%s2 + $0x1b0] sm:$0xff]
        %v889 = vld [vmem:[%s2 + $0x1b8] sm:$0xff]
        %v890 = vld [vmem:[%s2 + $0x1c0] sm:$0xff]
        %v891 = vld [vmem:[%s2 + $0x1c8] sm:$0xff]
        %v892 = vld [vmem:[%s2 + $0x1d0] sm:$0xff]
        %v893 = vld [vmem:[%s2 + $0x1d8] sm:$0xff]
        %v894 = vld [vmem:[%s2 + $0x1e0] sm:$0xff]
        %v895 = vld [vmem:[%s2 + $0x1e8] sm:$0xff]
        %v896 = vld [vmem:[%s2 + $0x1f0] sm:$0xff]
        %v897 = vld [vmem:[%s2 + $0x1f8] sm:$0xff]
        %898 = vset.pattern.permute.xlu0 1
        %899 = vperm.xlu0 %898, %v256
        %v900 = vpop.permute.xlu0 %899
        %902 = vset.pattern.permute.xlu0 1
        %903 = vperm.xlu0 %902, %v257
        %v904 = vpop.permute.xlu0 %903
        %906 = vset.pattern.permute.xlu0 1
        %907 = vperm.xlu0 %906, %v258
        %v908 = vpop.permute.xlu0 %907
        %910 = vset.pattern.permute.xlu0 1
        %911 = vperm.xlu0 %910, %v259
        %v912 = vpop.permute.xlu0 %911
        %914 = vset.pattern.permute.xlu0 1
        %915 = vperm.xlu0 %914, %v260
        %v916 = vpop.permute.xlu0 %915
        %918 = vset.pattern.permute.xlu0 1
        %919 = vperm.xlu0 %918, %v261
        %v920 = vpop.permute.xlu0 %919
        %922 = vset.pattern.permute.xlu0 1
        %923 = vperm.xlu0 %922, %v262
        %v924 = vpop.permute.xlu0 %923
        %926 = vset.pattern.permute.xlu0 1
        %927 = vperm.xlu0 %926, %v263
        %v928 = vpop.permute.xlu0 %927
        %930 = vset.pattern.permute.xlu0 1
        %931 = vperm.xlu0 %930, %v264
        %v932 = vpop.permute.xlu0 %931
        %934 = vset.pattern.permute.xlu0 1
        %935 = vperm.xlu0 %934, %v265
        %v936 = vpop.permute.xlu0 %935
        %938 = vset.pattern.permute.xlu0 1
        %939 = vperm.xlu0 %938, %v266
        %v940 = vpop.permute.xlu0 %939
        %942 = vset.pattern.permute.xlu0 1
        %943 = vperm.xlu0 %942, %v267
        %v944 = vpop.permute.xlu0 %943
        %946 = vset.pattern.permute.xlu0 1
        %947 = vperm.xlu0 %946, %v268
        %v948 = vpop.permute.xlu0 %947
        %950 = vset.pattern.permute.xlu0 1
        %951 = vperm.xlu0 %950, %v269
        %v952 = vpop.permute.xlu0 %951
        %954 = vset.pattern.permute.xlu0 1
        %955 = vperm.xlu0 %954, %v270
        %v956 = vpop.permute.xlu0 %955
        %958 = vset.pattern.permute.xlu0 1
        %959 = vperm.xlu0 %958, %v271
        %v960 = vpop.permute.xlu0 %959
        %962 = vset.pattern.permute.xlu0 1
        %963 = vperm.xlu0 %962, %v272
        %v964 = vpop.permute.xlu0 %963
        %966 = vset.pattern.permute.xlu0 1
        %967 = vperm.xlu0 %966, %v273
        %v968 = vpop.permute.xlu0 %967
        %970 = vset.pattern.permute.xlu0 1
        %971 = vperm.xlu0 %970, %v274
        %v972 = vpop.permute.xlu0 %971
        %974 = vset.pattern.permute.xlu0 1
        %975 = vperm.xlu0 %974, %v275
        %v976 = vpop.permute.xlu0 %975
        %978 = vset.pattern.permute.xlu0 1
        %979 = vperm.xlu0 %978, %v276
        %v980 = vpop.permute.xlu0 %979
        %982 = vset.pattern.permute.xlu0 1
        %983 = vperm.xlu0 %982, %v277
        %v984 = vpop.permute.xlu0 %983
        %986 = vset.pattern.permute.xlu0 1
        %987 = vperm.xlu0 %986, %v278
        %v988 = vpop.permute.xlu0 %987
        %990 = vset.pattern.permute.xlu0 1
        %991 = vperm.xlu0 %990, %v279
        %v992 = vpop.permute.xlu0 %991
        %994 = vset.pattern.permute.xlu0 1
        %995 = vperm.xlu0 %994, %v280
        %v996 = vpop.permute.xlu0 %995
        %998 = vset.pattern.permute.xlu0 1
        %999 = vperm.xlu0 %998, %v281
        %v1000 = vpop.permute.xlu0 %999
        %1002 = vset.pattern.permute.xlu0 1
        %1003 = vperm.xlu0 %1002, %v282
        %v1004 = vpop.permute.xlu0 %1003
        %1006 = vset.pattern.permute.xlu0 1
        %1007 = vperm.xlu0 %1006, %v283
        %v1008 = vpop.permute.xlu0 %1007
        %1010 = vset.pattern.permute.xlu0 1
        %1011 = vperm.xlu0 %1010, %v284
        %v1012 = vpop.permute.xlu0 %1011
        %1014 = vset.pattern.permute.xlu0 1
        %1015 = vperm.xlu0 %1014, %v285
        %v1016 = vpop.permute.xlu0 %1015
        %1018 = vset.pattern.permute.xlu0 1
        %1019 = vperm.xlu0 %1018, %v286
        %v1020 = vpop.permute.xlu0 %1019
        %1022 = vset.pattern.permute.xlu0 1
        %1023 = vperm.xlu0 %1022, %v287
        %v1024 = vpop.permute.xlu0 %1023
        %1026 = vmatprep.subr.mxu0 0.0
        %1027 = vmatpush1.msra.mxu0 %v802
        %1028 = vmatprep.subr.mxu0 0.0
        %1029 = vmatpush1.msra.mxu0 %v803
        %1030 = vmatprep.subr.mxu0 0.0
        %1031 = vmatpush1.msra.mxu0 %v804
        %1032 = vmatprep.subr.mxu0 0.0
        %1033 = vmatpush1.msra.mxu0 %v805
        %1034 = vmatprep.subr.mxu0 0.0
        %1035 = vmatpush1.msra.mxu0 %v806
        %1036 = vmatprep.subr.mxu0 0.0
        %1037 = vmatpush1.msra.mxu0 %v807
        %1038 = vmatprep.subr.mxu0 0.0
        %1039 = vmatpush1.msra.mxu0 %v808
        %1040 = vmatprep.subr.mxu0 0.0
        %1041 = vmatpush1.msra.mxu0 %v809
        %1042 = vmatprep.subr.mxu0 0.0
        %1043 = vmatpush1.msra.mxu0 %v810
        %1044 = vmatprep.subr.mxu0 0.0
        %1045 = vmatpush1.msra.mxu0 %v811
        %1046 = vmatprep.subr.mxu0 0.0
        %1047 = vmatpush1.msra.mxu0 %v812
        %1048 = vmatprep.subr.mxu0 0.0
        %1049 = vmatpush1.msra.mxu0 %v813
        %1050 = vmatprep.subr.mxu0 0.0
        %1051 = vmatpush1.msra.mxu0 %v814
        %1052 = vmatprep.subr.mxu0 0.0
        %1053 = vmatpush1.msra.mxu0 %v815
        %1054 = vmatprep.subr.mxu0 0.0
        %1055 = vmatpush1.msra.mxu0 %v816
        %1056 = vmatprep.subr.mxu0 0.0
        %1057 = vmatpush1.msra.mxu0 %v817
        %1058 = vmatprep.subr.mxu0 0.0
        %1059 = vmatpush1.msra.mxu0 %v818
        %1060 = vmatprep.subr.mxu0 0.0
        %1061 = vmatpush1.msra.mxu0 %v819
        %1062 = vmatprep.subr.mxu0 0.0
        %1063 = vmatpush1.msra.mxu0 %v820
        %1064 = vmatprep.subr.mxu0 0.0
        %1065 = vmatpush1.msra.mxu0 %v821
        %1066 = vmatprep.subr.mxu0 0.0
        %1067 = vmatpush1.msra.mxu0 %v822
        %1068 = vmatprep.subr.mxu0 0.0
        %1069 = vmatpush1.msra.mxu0 %v823
        %1070 = vmatprep.subr.mxu0 0.0
        %1071 = vmatpush1.msra.mxu0 %v824
        %1072 = vmatprep.subr.mxu0 0.0
        %1073 = vmatpush1.msra.mxu0 %v825
        %1074 = vmatprep.subr.mxu0 0.0
        %1075 = vmatpush1.msra.mxu0 %v826
        %1076 = vmatprep.subr.mxu0 0.0
        %1077 = vmatpush1.msra.mxu0 %v827
        %1078 = vmatprep.subr.mxu0 0.0
        %1079 = vmatpush1.msra.mxu0 %v828
        %1080 = vmatprep.subr.mxu0 0.0
        %1081 = vmatpush1.msra.mxu0 %v829
        %1082 = vmatprep.subr.mxu0 0.0
        %1083 = vmatpush1.msra.mxu0 %v830
        %1084 = vmatprep.subr.mxu0 0.0
        %1085 = vmatpush1.msra.mxu0 %v831
        %1086 = vmatprep.subr.mxu0 0.0
        %1087 = vmatpush1.msra.mxu0 %v832
        %1088 = vmatprep.subr.mxu0 0.0
        %1089 = vmatpush1.msra.mxu0 %v833
        %1090 = vmatprep.mubr.f32.mxu0 %v835
        %1091 = vmatmul.mubr.f32.gmra.mrb[0].mxu0 %v834
        %v1092 = vpop.f32.mrb[0].mxu0
        %v1093 = vadd.f32 %v900, %v1092
        %v1094 = vpop.f32.mrb[0].mxu0
        %1095 = vmatprep.mubr.f32.mxu0 %v837
        %1096 = vmatmul.mubr.f32.gmra.mrb[0].mxu0 %v836
        %v1097 = vpop.f32.mrb[0].mxu0
        %v1098 = vadd.f32 %v904, %v1097
        %v1099 = vpop.f32.mrb[0].mxu0
        %1100 = vmatprep.mubr.f32.mxu0 %v839
        %1101 = vmatmul.mubr.f32.gmra.mrb[0].mxu0 %v838
        %v1102 = vpop.f32.mrb[0].mxu0
        %v1103 = vadd.f32 %v908, %v1102
        %v1104 = vpop.f32.mrb[0].mxu0
        %1105 = vmatprep.mubr.f32.mxu0 %v841
        %1106 = vmatmul.mubr.f32.gmra.mrb[0].mxu0 %v840
        %v1107 = vpop.f32.mrb[0].mxu0
        %v1108 = vadd.f32 %v912, %v1107
        %v1109 = vpop.f32.mrb[0].mxu0
        %1110 = vmatprep.mubr.f32.mxu0 %v843
        %1111 = vmatmul.mubr.f32.gmra.mrb[0].mxu0 %v842
        %v1112 = vpop.f32.mrb[0].mxu0
        %v1113 = vadd.f32 %v916, %v1112
        %v1114 = vpop.f32.mrb[0].mxu0
        %1115 = vmatprep.mubr.f32.mxu0 %v845
        %1116 = vmatmul.mubr.f32.gmra.mrb[0].mxu0 %v844
        %v1117 = vpop.f32.mrb[0].mxu0
        %v1118 = vadd.f32 %v920, %v1117
        %v1119 = vpop.f32.mrb[0].mxu0
        %1120 = vmatprep.mubr.f32.mxu0 %v847
        %1121 = vmatmul.mubr.f32.gmra.mrb[0].mxu0 %v846
        %v1122 = vpop.f32.mrb[0].mxu0
        %v1123 = vadd.f32 %v924, %v1122
        %v1124 = vpop.f32.mrb[0].mxu0
        %1125 = vmatprep.mubr.f32.mxu0 %v849
        %1126 = vmatmul.mubr.f32.gmra.mrb[0].mxu0 %v848
        %v1127 = vpop.f32.mrb[0].mxu0
        %v1128 = vadd.f32 %v928, %v1127
        %v1129 = vpop.f32.mrb[0].mxu0
        %1130 = vmatprep.mubr.f32.mxu0 %v851
        %1131 = vmatmul.mubr.f32.gmra.mrb[0].mxu0 %v850
        %v1132 = vpop.f32.mrb[0].mxu0
        %v1133 = vadd.f32 %v932, %v1132
        %v1134 = vpop.f32.mrb[0].mxu0
        %1135 = vmatprep.mubr.f32.mxu0 %v853
        %1136 = vmatmul.mubr.f32.gmra.mrb[0].mxu0 %v852
        %v1137 = vpop.f32.mrb[0].mxu0
        %v1138 = vadd.f32 %v936, %v1137
        %v1139 = vpop.f32.mrb[0].mxu0
        %1140 = vmatprep.mubr.f32.mxu0 %v855
        %1141 = vmatmul.mubr.f32.gmra.mrb[0].mxu0 %v854
        %v1142 = vpop.f32.mrb[0].mxu0
        %v1143 = vadd.f32 %v940, %v1142
        %v1144 = vpop.f32.mrb[0].mxu0
        %1145 = vmatprep.mubr.f32.mxu0 %v857
        %1146 = vmatmul.mubr.f32.gmra.mrb[0].mxu0 %v856
        %v1147 = vpop.f32.mrb[0].mxu0
        %v1148 = vadd.f32 %v944, %v1147
        %v1149 = vpop.f32.mrb[0].mxu0
        %1150 = vmatprep.mubr.f32.mxu0 %v859
        %1151 = vmatmul.mubr.f32.gmra.mrb[0].mxu0 %v858
        %v1152 = vpop.f32.mrb[0].mxu0
        %v1153 = vadd.f32 %v948, %v1152
        %v1154 = vpop.f32.mrb[0].mxu0
        %1155 = vmatprep.mubr.f32.mxu0 %v861
        %1156 = vmatmul.mubr.f32.gmra.mrb[0].mxu0 %v860
        %v1157 = vpop.f32.mrb[0].mxu0
        %v1158 = vadd.f32 %v952, %v1157
        %v1159 = vpop.f32.mrb[0].mxu0
        %1160 = vmatprep.mubr.f32.mxu0 %v863
        %1161 = vmatmul.mubr.f32.gmra.mrb[0].mxu0 %v862
        %v1162 = vpop.f32.mrb[0].mxu0
        %v1163 = vadd.f32 %v956, %v1162
        %v1164 = vpop.f32.mrb[0].mxu0
        %1165 = vmatprep.mubr.f32.mxu0 %v865
        %1166 = vmatmul.mubr.f32.gmra.mrb[0].mxu0 %v864
        %v1167 = vpop.f32.mrb[0].mxu0
        %v1168 = vadd.f32 %v960, %v1167
        %v1169 = vpop.f32.mrb[0].mxu0
        %1170 = vmatprep.mubr.f32.mxu0 %v867
        %1171 = vmatmul.mubr.f32.gmra.mrb[0].mxu0 %v866
        %v1172 = vpop.f32.mrb[0].mxu0
        %v1173 = vadd.f32 %v964, %v1172
        %v1174 = vpop.f32.mrb[0].mxu0
        %1175 = vmatprep.mubr.f32.mxu0 %v869
        %1176 = vmatmul.mubr.f32.gmra.mrb[0].mxu0 %v868
        %v1177 = vpop.f32.mrb[0].mxu0
        %v1178 = vadd.f32 %v968, %v1177
        %v1179 = vpop.f32.mrb[0].mxu0
        %1180 = vmatprep.mubr.f32.mxu0 %v871
        %1181 = vmatmul.mubr.f32.gmra.mrb[0].mxu0 %v870
        %v1182 = vpop.f32.mrb[0].mxu0
        %v1183 = vadd.f32 %v972, %v1182
        %v1184 = vpop.f32.mrb[0].mxu0
        %1185 = vmatprep.mubr.f32.mxu0 %v873
        %1186 = vmatmul.mubr.f32.gmra.mrb[0].mxu0 %v872
        %v1187 = vpop.f32.mrb[0].mxu0
        %v1188 = vadd.f32 %v976, %v1187
        %v1189 = vpop.f32.mrb[0].mxu0
        %1190 = vmatprep.mubr.f32.mxu0 %v875
        %1191 = vmatmul.mubr.f32.gmra.mrb[0].mxu0 %v874
        %v1192 = vpop.f32.mrb[0].mxu0
        %v1193 = vadd.f32 %v980, %v1192
        %v1194 = vpop.f32.mrb[0].mxu0
        %1195 = vmatprep.mubr.f32.mxu0 %v877
        %1196 = vmatmul.mubr.f32.gmra.mrb[0].mxu0 %v876
        %v1197 = vpop.f32.mrb[0].mxu0
        %v1198 = vadd.f32 %v984, %v1197
        %v1199 = vpop.f32.mrb[0].mxu0
        %1200 = vmatprep.mubr.f32.mxu0 %v879
        %1201 = vmatmul.mubr.f32.gmra.mrb[0].mxu0 %v878
        %v1202 = vpop.f32.mrb[0].mxu0
        %v1203 = vadd.f32 %v988, %v1202
        %v1204 = vpop.f32.mrb[0].mxu0
        %1205 = vmatprep.mubr.f32.mxu0 %v881
        %1206 = vmatmul.mubr.f32.gmra.mrb[0].mxu0 %v880
        %v1207 = vpop.f32.mrb[0].mxu0
        %v1208 = vadd.f32 %v992, %v1207
        %v1209 = vpop.f32.mrb[0].mxu0
        %1210 = vmatprep.mubr.f32.mxu0 %v883
        %1211 = vmatmul.mubr.f32.gmra.mrb[0].mxu0 %v882
        %v1212 = vpop.f32.mrb[0].mxu0
        %v1213 = vadd.f32 %v996, %v1212
        %v1214 = vpop.f32.mrb[0].mxu0
        %1215 = vmatprep.mubr.f32.mxu0 %v885
        %1216 = vmatmul.mubr.f32.gmra.mrb[0].mxu0 %v884
        %v1217 = vpop.f32.mrb[0].mxu0
        %v1218 = vadd.f32 %v1000, %v1217
        %v1219 = vpop.f32.mrb[0].mxu0
        %1220 = vmatprep.mubr.f32.mxu0 %v887
        %1221 = vmatmul.mubr.f32.gmra.mrb[0].mxu0 %v886
        %v1222 = vpop.f32.mrb[0].mxu0
        %v1223 = vadd.f32 %v1004, %v1222
        %v1224 = vpop.f32.mrb[0].mxu0
        %1225 = vmatprep.mubr.f32.mxu0 %v889
        %1226 = vmatmul.mubr.f32.gmra.mrb[0].mxu0 %v888
        %v1227 = vpop.f32.mrb[0].mxu0
        %v1228 = vadd.f32 %v1008, %v1227
        %v1229 = vpop.f32.mrb[0].mxu0
        %1230 = vmatprep.mubr.f32.mxu0 %v891
        %1231 = vmatmul.mubr.f32.gmra.mrb[0].mxu0 %v890
        %v1232 = vpop.f32.mrb[0].mxu0
        %v1233 = vadd.f32 %v1012, %v1232
        %v1234 = vpop.f32.mrb[0].mxu0
        %1235 = vmatprep.mubr.f32.mxu0 %v893
        %1236 = vmatmul.mubr.f32.gmra.mrb[0].mxu0 %v892
        %v1237 = vpop.f32.mrb[0].mxu0
        %v1238 = vadd.f32 %v1016, %v1237
        %v1239 = vpop.f32.mrb[0].mxu0
        %1240 = vmatprep.mubr.f32.mxu0 %v895
        %1241 = vmatmul.mubr.f32.gmra.mrb[0].mxu0 %v894
        %v1242 = vpop.f32.mrb[0].mxu0
        %v1243 = vadd.f32 %v1020, %v1242
        %v1244 = vpop.f32.mrb[0].mxu0
        %1245 = vmatprep.mubr.f32.mxu0 %v897
        %1246 = vmatmul.mubr.f32.gmra.mrb[0].mxu0 %v896
        %v1247 = vpop.f32.mrb[0].mxu0
        %v1248 = vadd.f32 %v1024, %v1247
        %v1249 = vpop.f32.mrb[0].mxu0
        %1250 = vdwg.mxu0
        %v1251 = vmax.f32 %v1093, 0.0
        %v1252 = vmax.f32 %v1098, 0.0
        %v1253 = vmax.f32 %v1103, 0.0
        %v1254 = vmax.f32 %v1108, 0.0
        %v1255 = vmax.f32 %v1113, 0.0
        %v1256 = vmax.f32 %v1118, 0.0
        %v1257 = vmax.f32 %v1123, 0.0
        %v1258 = vmax.f32 %v1128, 0.0
        %v1259 = vmax.f32 %v1133, 0.0
        %v1260 = vmax.f32 %v1138, 0.0
        %v1261 = vmax.f32 %v1143, 0.0
        %v1262 = vmax.f32 %v1148, 0.0
        %v1263 = vmax.f32 %v1153, 0.0
        %v1264 = vmax.f32 %v1158, 0.0
        %v1265 = vmax.f32 %v1163, 0.0
        %v1266 = vmax.f32 %v1168, 0.0
        %v1267 = vmax.f32 %v1173, 0.0
        %v1268 = vmax.f32 %v1178, 0.0
        %v1269 = vmax.f32 %v1183, 0.0
        %v1270 = vmax.f32 %v1188, 0.0
        %v1271 = vmax.f32 %v1193, 0.0
        %v1272 = vmax.f32 %v1198, 0.0
        %v1273 = vmax.f32 %v1203, 0.0
        %v1274 = vmax.f32 %v1208, 0.0
        %v1275 = vmax.f32 %v1213, 0.0
        %v1276 = vmax.f32 %v1218, 0.0
        %v1277 = vmax.f32 %v1223, 0.0
        %v1278 = vmax.f32 %v1228, 0.0
        %v1279 = vmax.f32 %v1233, 0.0
        %v1280 = vmax.f32 %v1238, 0.0
        %v1281 = vmax.f32 %v1243, 0.0
        %v1282 = vmax.f32 %v1248, 0.0
        %1283 = vset.pattern.permute.xlu0 2
        %1284 = vperm.xlu0 %1283, %v256
        %v1285 = vpop.permute.xlu0 %1284
        %1287 = vset.pattern.permute.xlu0 2
        %1288 = vperm.xlu0 %1287, %v257
        %v1289 = vpop.permute.xlu0 %1288
        %1291 = vset.pattern.permute.xlu0 2
        %1292 = vperm.xlu0 %1291, %v258
        %v1293 = vpop.permute.xlu0 %1292
        %1295 = vset.pattern.permute.xlu0 2
        %1296 = vperm.xlu0 %1295, %v259
        %v1297 = vpop.permute.xlu0 %1296
        %1299 = vset.pattern.permute.xlu0 2
        %1300 = vperm.xlu0 %1299, %v260
        %v1301 = vpop.permute.xlu0 %1300
        %1303 = vset.pattern.permute.xlu0 2
        %1304 = vperm.xlu0 %1303, %v261
        %v1305 = vpop.permute.xlu0 %1304
        %1307 = vset.pattern.permute.xlu0 2
        %1308 = vperm.xlu0 %1307, %v262
        %v1309 = vpop.permute.xlu0 %1308
        %1311 = vset.pattern.permute.xlu0 2
        %1312 = vperm.xlu0 %1311, %v263
        %v1313 = vpop.permute.xlu0 %1312
        %1315 = vset.pattern.permute.xlu0 2
        %1316 = vperm.xlu0 %1315, %v264
        %v1317 = vpop.permute.xlu0 %1316
        %1319 = vset.pattern.permute.xlu0 2
        %1320 = vperm.xlu0 %1319, %v265
        %v1321 = vpop.permute.xlu0 %1320
        %1323 = vset.pattern.permute.xlu0 2
        %1324 = vperm.xlu0 %1323, %v266
        %v1325 = vpop.permute.xlu0 %1324
        %1327 = vset.pattern.permute.xlu0 2
        %1328 = vperm.xlu0 %1327, %v267
        %v1329 = vpop.permute.xlu0 %1328
        %1331 = vset.pattern.permute.xlu0 2
        %1332 = vperm.xlu0 %1331, %v268
        %v1333 = vpop.permute.xlu0 %1332
        %1335 = vset.pattern.permute.xlu0 2
        %1336 = vperm.xlu0 %1335, %v269
        %v1337 = vpop.permute.xlu0 %1336
        %1339 = vset.pattern.permute.xlu0 2
        %1340 = vperm.xlu0 %1339, %v270
        %v1341 = vpop.permute.xlu0 %1340
        %1343 = vset.pattern.permute.xlu0 2
        %1344 = vperm.xlu0 %1343, %v271
        %v1345 = vpop.permute.xlu0 %1344
        %1347 = vset.pattern.permute.xlu0 2
        %1348 = vperm.xlu0 %1347, %v272
        %v1349 = vpop.permute.xlu0 %1348
        %1351 = vset.pattern.permute.xlu0 2
        %1352 = vperm.xlu0 %1351, %v273
        %v1353 = vpop.permute.xlu0 %1352
        %1355 = vset.pattern.permute.xlu0 2
        %1356 = vperm.xlu0 %1355, %v274
        %v1357 = vpop.permute.xlu0 %1356
        %1359 = vset.pattern.permute.xlu0 2
        %1360 = vperm.xlu0 %1359, %v275
        %v1361 = vpop.permute.xlu0 %1360
        %1363 = vset.pattern.permute.xlu0 2
        %1364 = vperm.xlu0 %1363, %v276
        %v1365 = vpop.permute.xlu0 %1364
        %1367 = vset.pattern.permute.xlu0 2
        %1368 = vperm.xlu0 %1367, %v277
        %v1369 = vpop.permute.xlu0 %1368
        %1371 = vset.pattern.permute.xlu0 2
        %1372 = vperm.xlu0 %1371, %v278
        %v1373 = vpop.permute.xlu0 %1372
        %1375 = vset.pattern.permute.xlu0 2
        %1376 = vperm.xlu0 %1375, %v279
        %v1377 = vpop.permute.xlu0 %1376
        %1379 = vset.pattern.permute.xlu0 2
        %1380 = vperm.xlu0 %1379, %v280
        %v1381 = vpop.permute.xlu0 %1380
        %1383 = vset.pattern.permute.xlu0 2
        %1384 = vperm.xlu0 %1383, %v281
        %v1385 = vpop.permute.xlu0 %1384
        %1387 = vset.pattern.permute.xlu0 2
        %1388 = vperm.xlu0 %1387, %v282
        %v1389 = vpop.permute.xlu0 %1388
        %1391 = vset.pattern.permute.xlu0 2
        %1392 = vperm.xlu0 %1391, %v283
        %v1393 = vpop.permute.xlu0 %1392
        %1395 = vset.pattern.permute.xlu0 2
        %1396 = vperm.xlu0 %1395, %v284
        %v1397 = vpop.permute.xlu0 %1396
        %1399 = vset.pattern.permute.xlu0 2
        %1400 = vperm.xlu0 %1399, %v285
        %v1401 = vpop.permute.xlu0 %1400
        %1403 = vset.pattern.permute.xlu0 2
        %1404 = vperm.xlu0 %1403, %v286
        %v1405 = vpop.permute.xlu0 %1404
        %1407 = vset.pattern.permute.xlu0 2
        %1408 = vperm.xlu0 %1407, %v287
        %v1409 = vpop.permute.xlu0 %1408
        %v1411 = vmul.f32 %v1251, %v1285
        %v1412 = vmul.f32 %v1252, %v1289
        %v1413 = vmul.f32 %v1253, %v1293
        %v1414 = vmul.f32 %v1254, %v1297
        %v1415 = vmul.f32 %v1255, %v1301
        %v1416 = vmul.f32 %v1256, %v1305
        %v1417 = vmul.f32 %v1257, %v1309
        %v1418 = vmul.f32 %v1258, %v1313
        %v1419 = vmul.f32 %v1259, %v1317
        %v1420 = vmul.f32 %v1260, %v1321
        %v1421 = vmul.f32 %v1261, %v1325
        %v1422 = vmul.f32 %v1262, %v1329
        %v1423 = vmul.f32 %v1263, %v1333
        %v1424 = vmul.f32 %v1264, %v1337
        %v1425 = vmul.f32 %v1265, %v1341
        %v1426 = vmul.f32 %v1266, %v1345
        %v1427 = vmul.f32 %v1267, %v1349
        %v1428 = vmul.f32 %v1268, %v1353
        %v1429 = vmul.f32 %v1269, %v1357
        %v1430 = vmul.f32 %v1270, %v1361
        %v1431 = vmul.f32 %v1271, %v1365
        %v1432 = vmul.f32 %v1272, %v1369
        %v1433 = vmul.f32 %v1273, %v1373
        %v1434 = vmul.f32 %v1274, %v1377
        %v1435 = vmul.f32 %v1275, %v1381
        %v1436 = vmul.f32 %v1276, %v1385
        %v1437 = vmul.f32 %v1277, %v1389
        %v1438 = vmul.f32 %v1278, %v1393
        %v1439 = vmul.f32 %v1279, %v1397
        %v1440 = vmul.f32 %v1280, %v1401
        %v1441 = vmul.f32 %v1281, %v1405
        %v1442 = vmul.f32 %v1282, %v1409
        %vm1443 = vcmask 130048
        %v1444 = vsel %vm1443, %v1411, 0.0
        %v1445 = vsel %vm1443, %v1412, 0.0
        %v1446 = vadd.f32 %v1444, %v1445
        %v1447 = vsel %vm1443, %v1413, 0.0
        %v1448 = vadd.f32 %v1446, %v1447
        %v1449 = vsel %vm1443, %v1414, 0.0
        %v1450 = vadd.f32 %v1448, %v1449
        %v1451 = vsel %vm1443, %v1415, 0.0
        %v1452 = vadd.f32 %v1450, %v1451
        %v1453 = vsel %vm1443, %v1416, 0.0
        %v1454 = vadd.f32 %v1452, %v1453
        %v1455 = vsel %vm1443, %v1417, 0.0
        %v1456 = vadd.f32 %v1454, %v1455
        %v1457 = vsel %vm1443, %v1418, 0.0
        %v1458 = vadd.f32 %v1456, %v1457
        %v1459 = vsel %vm1443, %v1419, 0.0
        %v1460 = vadd.f32 %v1458, %v1459
        %v1461 = vsel %vm1443, %v1420, 0.0
        %v1462 = vadd.f32 %v1460, %v1461
        %v1463 = vsel %vm1443, %v1421, 0.0
        %v1464 = vadd.f32 %v1462, %v1463
        %v1465 = vsel %vm1443, %v1422, 0.0
        %v1466 = vadd.f32 %v1464, %v1465
        %v1467 = vsel %vm1443, %v1423, 0.0
        %v1468 = vadd.f32 %v1466, %v1467
        %v1469 = vsel %vm1443, %v1424, 0.0
        %v1470 = vadd.f32 %v1468, %v1469
        %v1471 = vsel %vm1443, %v1425, 0.0
        %v1472 = vadd.f32 %v1470, %v1471
        %v1473 = vsel %vm1443, %v1426, 0.0
        %v1474 = vadd.f32 %v1472, %v1473
        %v1475 = vsel %vm1443, %v1427, 0.0
        %v1476 = vadd.f32 %v1474, %v1475
        %v1477 = vsel %vm1443, %v1428, 0.0
        %v1478 = vadd.f32 %v1476, %v1477
        %v1479 = vsel %vm1443, %v1429, 0.0
        %v1480 = vadd.f32 %v1478, %v1479
        %v1481 = vsel %vm1443, %v1430, 0.0
        %v1482 = vadd.f32 %v1480, %v1481
        %v1483 = vsel %vm1443, %v1431, 0.0
        %v1484 = vadd.f32 %v1482, %v1483
        %v1485 = vsel %vm1443, %v1432, 0.0
        %v1486 = vadd.f32 %v1484, %v1485
        %v1487 = vsel %vm1443, %v1433, 0.0
        %v1488 = vadd.f32 %v1486, %v1487
        %v1489 = vsel %vm1443, %v1434, 0.0
        %v1490 = vadd.f32 %v1488, %v1489
        %v1491 = vsel %vm1443, %v1435, 0.0
        %v1492 = vadd.f32 %v1490, %v1491
        %v1493 = vsel %vm1443, %v1436, 0.0
        %v1494 = vadd.f32 %v1492, %v1493
        %v1495 = vsel %vm1443, %v1437, 0.0
        %v1496 = vadd.f32 %v1494, %v1495
        %v1497 = vsel %vm1443, %v1438, 0.0
        %v1498 = vadd.f32 %v1496, %v1497
        %v1499 = vsel %vm1443, %v1439, 0.0
        %v1500 = vadd.f32 %v1498, %v1499
        %v1501 = vsel %vm1443, %v1440, 0.0
        %v1502 = vadd.f32 %v1500, %v1501
        %v1503 = vsel %vm1443, %v1441, 0.0
        %v1504 = vadd.f32 %v1502, %v1503
        %v1505 = vsel %vm1443, %v1442, 0.0
        %v1506 = vadd.f32 %v1504, %v1505
        %v1507 = vrot.slane %v1506, 4
        %v1508 = vadd.f32 %v1506, %v1507
        %v1509 = vrot.slane %v1508, 2
        %v1510 = vadd.f32 %v1508, %v1509
        %v1511 = vrot.slane %v1510, 1
        %v1512 = vadd.f32 %v1510, %v1511
        %s1513 = sld [smem:[#allocation2]]
        %v1514 = vstv %s1513
        %v1515 = vadd.f32 %v1512, %v1514
        %vm1516 = vcmask 122880
        %1517 = vst.msk [vmem:[%s239] sm:$0x1] %vm1516, %v1515
        %s1518 = sand.u32 %s154, 1
        %s1519 = scalar_lea.sflag [#allocation4], %s1518
        %s1520 = sand.u32 %s154, 1
        %s1521 = scalar_lea.vmem [#allocation3], %s1520
        // Predicated region
        $region41: #{tpu_custom_call.1} parent=39 // pred_check
          %p1522 = pneg %p164
        $region42: #{tpu_custom_call.1} parent=39 // pred_check_branch
          %1524 = sbr.rel (%p1522) target = $region44
        $region43: #{tpu_custom_call.1} parent=39 // pred_region
          %s1526 = ssub.s32 16, 16
          %1527 = vsyncadd %s1519, %s1526
          %s1528 = sadd.s32 %s25, %s24
          %s1529 = smul.addr %s1528, 16
          %s1530 = scalar_lea.hbm %s5, %s1529
          %s1532 = sshll.u32 %s1521, 4
          %s1533 = int_to_ptr.vmem [resolvable:$true] %s1532
          %1535 = dma.vmem_to_hbm [thread:$0]  %s1533, 16, %s1530, %s1519
        $region44: #{tpu_custom_call.1} parent=39 // pred_fallthru
          _
      $region40: #{tpu_custom_call.1} parent=5 // pred_fallthru
        _
      %p1536 = scmp.le.s32.totalorder 2, %s15
      // Predicated region
      $region45: #{tpu_custom_call.1} parent=5 // pred_check
        %p1537 = pneg %p1536
      $region46: #{tpu_custom_call.1} parent=5 // pred_check_branch
        %1539 = sbr.rel (%p1537) target = $region48
      $region47: #{tpu_custom_call.1} parent=5 // pred_region
        %s1540 = ssub.s32 %s15, 2
        // Predicated region
        $region49: #{tpu_custom_call.1} parent=47 // pred_check
          %p1541 = pneg %p170
        $region50: #{tpu_custom_call.1} parent=47 // pred_check_branch
          %1543 = sbr.rel (%p1541) target = $region52
        $region51: #{tpu_custom_call.1} parent=47 // pred_region
          %s1544 = sand.u32 %s155, 1
          %s1545 = scalar_lea.sflag [#allocation4], %s1544
          %s1546 = sand.u32 %s155, 1
          %s1547 = scalar_lea.vmem [#allocation3], %s1546
          %1548 = dma.done %s1545, 16
        $region52: #{tpu_custom_call.1} parent=47 // pred_fallthru
          _
      $region48: #{tpu_custom_call.1} parent=5 // pred_fallthru
        _
    $region6: #{tpu_custom_call.1} parent=1 // loop_footer
      %s19 = sadd.s32 1, %s15
    $region7: #{tpu_custom_call.1} parent=1 // loop_footer_branch
      %14 = sbr.rel target = $region3
    $region8: #{tpu_custom_call.1} parent=1 // loop_exit
      _
    %1549 = vsyncpa [#allocation4], 1
    %s1550 = scalar_lea.sflag [#allocation4], 1
    %1551 = vsyncpa %s1550, 1

</llo_original>
